<compile_context>
chip_gen: v7x
topology: tpu7x:2x2x1
jax: 0.10.0
libtpu: 0.0.40
codegen_flags: <defaults>
</compile_context>

<pallas_src>
import functools

import jax
import jax.numpy as jnp
from jax.experimental import pallas as pl
from jax.experimental.pallas import tpu as pltpu


NEG_SLOPE = 0.01  # nn.LeakyReLU() default negative_slope


def _leaky_relu(v):
    # negative_slope < 1  =>  max(v, slope*v) == leaky_relu(v); pure VPU work.
    return jnp.maximum(v, NEG_SLOPE * v)


# ----------------------------- fused Pallas kernel ---------------------------

def _dnn_fused_kernel(x_ref, w_emb_ref, b_emb_ref, w_hid_ref, b_hid_ref,
                      w_out_ref, b_out_ref, emb_ref, hid_ref, out_ref,
                      *, seq_len):
    """dense_emb -> lrelu -> dense_hid -> lrelu -> dense_out -> sigmoid.

    x_ref     : (TB*S, input_dim)        row tile (TB batches x S positions)
    w_emb_ref : (input_dim, embed_dim)   resident, pre-transposed
    w_hid_ref : (embed_dim, hid_dim)     resident, pre-transposed
    w_out_ref : (S, hid_dim, out_total)  resident, pre-transposed + reshaped
    b_*_ref   : (1, dim)                 resident, f32
    emb_ref   : (TB*S, embed_dim)        output
    hid_ref   : (TB*S, hid_dim)          output (wrapper flattens to flt)
    out_ref   : (TB, out_total)          output (f32)
    """
    mx = w_emb_ref.dtype                       # MXU operand dtype (f32 / bf16)

    # ---- layer 1: emb = leaky_relu(x @ w_emb + b_emb) -----------------------
    emb = jnp.dot(x_ref[...], w_emb_ref[...],
                  preferred_element_type=jnp.float32)
    emb = _leaky_relu(emb + b_emb_ref[...])                  # f32 epilogue
    emb_ref[...] = emb.astype(emb_ref.dtype)                 # module output

    # ---- layer 2: hid = leaky_relu(emb @ w_hid + b_hid); emb stays on-chip --
    hid = jnp.dot(emb.astype(mx), w_hid_ref[...],
                  preferred_element_type=jnp.float32)
    hid = _leaky_relu(hid + b_hid_ref[...])                  # (TB*S, H), f32
    hid_ref[...] = hid.astype(hid_ref.dtype)                 # module output (flt)

    # ---- layer 3: out = sigmoid(flatten(hid) @ w_out + b_out) ---------------
    # Computed as an accumulation over the sequence axis s:
    #     out[b] = sigmoid(b_out + sum_s hid[b, s, :] @ w_out[s])
    # hid is reused straight from VMEM/vregs; only the leading (sublane) dim
    # is split (lane dim untouched), no (TB, S*H) lane-crossing flatten.
    tb = out_ref.shape[0]
    hid3 = hid.reshape(tb, seq_len, hid.shape[-1])
    acc = jnp.zeros(out_ref.shape, jnp.float32)
    for s in range(seq_len):                                 # static unroll, S small
        acc = acc + jnp.dot(hid3[:, s, :].astype(mx), w_out_ref[s],
                            preferred_element_type=jnp.float32)
    z = acc + b_out_ref[...]
    out_ref[...] = pl.reciprocal(1.0 + jnp.exp(-z),          # exp -> EUP slot
                                 approx=False).astype(out_ref.dtype)


# ----------------------------- wrapper ---------------------------------------

def dnn_forward(past_window, x, params, *, target_size, output_dim,
                batch_tile=512, compute_dtype=jnp.float32):
    """Pallas port of DNN.forward. Returns (emb, flt, out)."""
    cat = jnp.concatenate((past_window, x), axis=1)          # (B, S, input_dim)
    B, S, input_dim = cat.shape
    embed_dim = params["w_emb"].shape[1]
    hid_dim = params["w_hid"].shape[1]
    out_total = target_size * output_dim
    assert params["w_out"].shape == (S * hid_dim, out_total)

    mx = jnp.dtype(compute_dtype)
    x2d = cat.reshape(B * S, input_dim).astype(mx)
    w_emb = params["w_emb"].astype(mx)
    w_hid = params["w_hid"].astype(mx)
    w_out3 = params["w_out"].reshape(S, hid_dim, out_total).astype(mx)
    b_emb = params["b_emb"].astype(jnp.float32)
    b_hid = params["b_hid"].astype(jnp.float32)
    b_out = params["b_out"].astype(jnp.float32)

    # Batch tile: large tiles amortize the ~0.35us/grid-step overhead.  If the
    # whole batch fits one tile, split it into two 8-aligned halves so the
    # ("parallel",) axis can shard across v7x's 2 TensorCores.  TB must be a
    # multiple of 8 (sublane of the (TB, out_total) output block) or equal B.
    if B > batch_tile:
        TB = batch_tile                                      # multiple of 8
    else:
        half = ((pl.cdiv(B, 2) + 7) // 8) * 8
        TB = half if half < B else B
    grid = (pl.cdiv(B, TB),)

    # VMEM budget from actual footprint (double-buffered tiles + resident
    # weights + live f32 intermediates), capped v7x-safe (< 64 MiB physical).
    isz = mx.itemsize
    tile_bytes = (TB * S * (input_dim + embed_dim + hid_dim) * isz
                  + TB * out_total * 4)
    weight_bytes = ((input_dim * embed_dim + embed_dim * hid_dim
                     + S * hid_dim * out_total) * isz
                    + (embed_dim + hid_dim + out_total) * 4)
    live_bytes = TB * S * (embed_dim + hid_dim) * 4 + TB * out_total * 4
    vmem_limit = int(min(max(2 * (tile_bytes + weight_bytes) + live_bytes
                             + (4 << 20), 8 << 20), 48 << 20))

    flops = 2 * B * S * (input_dim * embed_dim + embed_dim * hid_dim
                         + hid_dim * out_total)
    bytes_accessed = (B * S * input_dim * isz + weight_bytes
                      + B * S * (embed_dim + hid_dim) * isz
                      + B * out_total * 4)

    kernel = functools.partial(_dnn_fused_kernel, seq_len=S)
    emb2d, hid2d, out2d = pl.pallas_call(
        kernel,
        out_shape=(
            jax.ShapeDtypeStruct((B * S, embed_dim), mx),
            jax.ShapeDtypeStruct((B * S, hid_dim), mx),
            jax.ShapeDtypeStruct((B, out_total), jnp.float32),
        ),
        grid=grid,
        in_specs=[
            pl.BlockSpec((TB * S, input_dim), lambda i: (i, 0)),
            pl.BlockSpec((input_dim, embed_dim), lambda i: (0, 0)),
            pl.BlockSpec((1, embed_dim), lambda i: (0, 0)),
            pl.BlockSpec((embed_dim, hid_dim), lambda i: (0, 0)),
            pl.BlockSpec((1, hid_dim), lambda i: (0, 0)),
            pl.BlockSpec((S, hid_dim, out_total), lambda i: (0, 0, 0)),
            pl.BlockSpec((1, out_total), lambda i: (0, 0)),
        ],
        out_specs=(
            pl.BlockSpec((TB * S, embed_dim), lambda i: (i, 0)),
            pl.BlockSpec((TB * S, hid_dim), lambda i: (i, 0)),
            pl.BlockSpec((TB, out_total), lambda i: (i, 0)),
        ),
        compiler_params=pltpu.CompilerParams(
            dimension_semantics=("parallel",),
            vmem_limit_bytes=vmem_limit),
        cost_estimate=pl.CostEstimate(
            flops=flops, transcendentals=B * out_total,
            bytes_accessed=bytes_accessed),
    )(x2d, w_emb, b_emb, w_hid, b_hid, w_out3, b_out)

    emb = emb2d.reshape(B, S, embed_dim)
    flt = hid2d.reshape(B, S * hid_dim)      # torch.flatten(hid, 1), row-major
    out = out2d.reshape(B, target_size, output_dim)  # .view(-1, T, O)
    return emb, flt, out


# ----------------------------- reference (pure JAX) ---------------------------

def dnn_reference(past_window, x, params, *, target_size, output_dim):
    cat = jnp.concatenate((past_window, x), axis=1)
    emb = _leaky_relu(cat @ params["w_emb"] + params["b_emb"][0])
    hid = _leaky_relu(emb @ params["w_hid"] + params["b_hid"][0])
    flt = hid.reshape(hid.shape[0], -1)
    z = flt @ params["w_out"] + params["b_out"][0]
    out = 1.0 / (1.0 + jnp.exp(-z))
    return emb, flt, out.reshape(-1, target_size, output_dim)


# ----------------------------- main -------------------------------------------

if __name__ == "__main__":
    # opt: input_dim=16, embed_dim=32, hid_dim=32, memory_size=6, source_size=2,
    #      target_size=4, output_dim=8 ; batch B=16 (exercises the 2-step grid)
    B, memory_size, source_size = 16, 6, 2
    input_dim, embed_dim, hid_dim = 16, 32, 32
    target_size, output_dim = 4, 8
    S = memory_size + source_size

    key0 = jax.random.PRNGKey(0)
    ks = jax.random.split(key0, 8)

    def init_linear(kw, kb, hin, hout):
        # PyTorch nn.Linear init, weight stored PRE-TRANSPOSED as (Hin, Hout)
        # once at parameter-prep time -> no per-call / in-kernel transpose.
        bound = 1.0 / (hin ** 0.5)
        w_t = jax.random.uniform(kw, (hin, hout), jnp.float32, -bound, bound)
        b = jax.random.uniform(kb, (1, hout), jnp.float32, -bound, bound)
        return w_t, b

    w_emb, b_emb = init_linear(ks[0], ks[1], input_dim, embed_dim)
    w_hid, b_hid = init_linear(ks[2], ks[3], embed_dim, hid_dim)
    w_out, b_out = init_linear(ks[4], ks[5], hid_dim * S,
                               output_dim * target_size)
    params = dict(w_emb=w_emb, b_emb=b_emb, w_hid=w_hid, b_hid=b_hid,
                  w_out=w_out, b_out=b_out)

    past_window = jax.random.normal(ks[6], (B, memory_size, input_dim), jnp.float32)
    x_in = jax.random.normal(ks[7], (B, source_size, input_dim), jnp.float32)

    # ---- f32 operand path: strict check against pure-JAX reference ----------
    emb_o, flt_o, out_o = dnn_forward(
        past_window, x_in, params, target_size=target_size, output_dim=output_dim)
    jax.block_until_ready((emb_o, flt_o, out_o))

    emb_r, flt_r, out_r = dnn_reference(
        past_window, x_in, params, target_size=target_size, output_dim=output_dim)

    assert emb_o.shape == (B, S, embed_dim)
    assert flt_o.shape == (B, S * hid_dim)
    assert out_o.shape == (B, target_size, output_dim)
    assert jnp.allclose(emb_o, emb_r, atol=1e-4, rtol=1e-4)
    assert jnp.allclose(flt_o, flt_r, atol=1e-4, rtol=1e-4)
    assert jnp.allclose(out_o, out_r, atol=1e-4, rtol=1e-4)

    # ---- bf16 operand path (MXU-native on v6e/v7x, f32 epilogue) ------------
    emb_b, flt_b, out_b = dnn_forward(
        past_window, x_in, params, target_size=target_size,
        output_dim=output_dim, compute_dtype=jnp.bfloat16)
    jax.block_until_ready((emb_b, flt_b, out_b))
    assert out_b.shape == (B, target_size, output_dim)
    assert jnp.allclose(out_b.astype(jnp.float32), out_r, atol=5e-2)

    print("KERNEL_OK")
</pallas_src>

<mosaic_0001>
module attributes {stable_mosaic.version = 11 : i64} {
  func.func @_dnn_fused_kernel(%arg0: i32, %arg1: memref<64x16xf32, #tpu.memory_space<vmem>>, %arg2: memref<16x32xf32, #tpu.memory_space<vmem>>, %arg3: memref<1x32xf32, #tpu.memory_space<vmem>>, %arg4: memref<32x32xf32, #tpu.memory_space<vmem>>, %arg5: memref<1x32xf32, #tpu.memory_space<vmem>>, %arg6: memref<8x32x32xf32, #tpu.memory_space<vmem>>, %arg7: memref<1x32xf32, #tpu.memory_space<vmem>>, %arg8: memref<64x32xf32, #tpu.memory_space<vmem>>, %arg9: memref<64x32xf32, #tpu.memory_space<vmem>>, %arg10: memref<8x32xf32, #tpu.memory_space<vmem>>) attributes {dimension_semantics = [#tpu.dimension_semantics<parallel>], iteration_bounds = array<i64: 2>, scalar_prefetch = 0 : i64, scratch_operands = 0 : i64, tpu.core_type = #tpu.core_type<tc>, window_params = [{transform_indices = @transform_0, window_bounds = array<i64: 64, 16>}, {pipeline_mode = #tpu.pipeline_mode<synchronous>, transform_indices = @transform_1, window_bounds = array<i64: 16, 32>}, {pipeline_mode = #tpu.pipeline_mode<synchronous>, transform_indices = @transform_2, window_bounds = array<i64: 1, 32>}, {pipeline_mode = #tpu.pipeline_mode<synchronous>, transform_indices = @transform_3, window_bounds = array<i64: 32, 32>}, {pipeline_mode = #tpu.pipeline_mode<synchronous>, transform_indices = @transform_4, window_bounds = array<i64: 1, 32>}, {pipeline_mode = #tpu.pipeline_mode<synchronous>, transform_indices = @transform_5, window_bounds = array<i64: 8, 32, 32>}, {pipeline_mode = #tpu.pipeline_mode<synchronous>, transform_indices = @transform_6, window_bounds = array<i64: 1, 32>}, {transform_indices = @transform_7, window_bounds = array<i64: 64, 32>}, {transform_indices = @transform_8, window_bounds = array<i64: 64, 32>}, {transform_indices = @transform_9, window_bounds = array<i64: 8, 32>}]} {
    %c0 = arith.constant 0 : index
    %c0_0 = arith.constant 0 : index
    %0 = vector.load %arg1[%c0, %c0_0] : memref<64x16xf32, #tpu.memory_space<vmem>>, vector<64x16xf32>
    %c0_1 = arith.constant 0 : index
    %c0_2 = arith.constant 0 : index
    %1 = vector.load %arg2[%c0_1, %c0_2] : memref<16x32xf32, #tpu.memory_space<vmem>>, vector<16x32xf32>
    %cst = arith.constant dense<0.000000e+00> : vector<64x32xf32>
    %2 = tpu.matmul %0, %1, %cst {dimension_numbers = #tpu.dot_dimension_numbers<[1], [0], [0], [1], [0, 0, 1, 1], [], []>} : vector<64x16xf32>, vector<16x32xf32>, vector<64x32xf32> -> vector<64x32xf32>
    %c0_3 = arith.constant 0 : index
    %c0_4 = arith.constant 0 : index
    %3 = vector.load %arg3[%c0_3, %c0_4] : memref<1x32xf32, #tpu.memory_space<vmem>>, vector<1x32xf32>
    %4 = vector.broadcast %3 : vector<1x32xf32> to vector<64x32xf32>
    %5 = arith.addf %2, %4 : vector<64x32xf32>
    %cst_5 = arith.constant 0.00999999977 : f32
    %6 = vector.broadcast %cst_5 : f32 to vector<64x32xf32>
    %7 = arith.mulf %6, %5 : vector<64x32xf32>
    %8 = arith.maximumf %5, %7 : vector<64x32xf32>
    %c0_6 = arith.constant 0 : index
    %c0_7 = arith.constant 0 : index
    %9 = vector.load %arg8[%c0_6, %c0_7] : memref<64x32xf32, #tpu.memory_space<vmem>>, vector<64x32xf32>
    tpu.vector_store %arg8[%c0_6, %c0_7], %8 {strides = array<i32>} : memref<64x32xf32, #tpu.memory_space<vmem>>, vector<64x32xf32>,
    %c0_8 = arith.constant 0 : index
    %c0_9 = arith.constant 0 : index
    %10 = vector.load %arg4[%c0_8, %c0_9] : memref<32x32xf32, #tpu.memory_space<vmem>>, vector<32x32xf32>
    %cst_10 = arith.constant dense<0.000000e+00> : vector<64x32xf32>
    %11 = tpu.matmul %8, %10, %cst_10 {dimension_numbers = #tpu.dot_dimension_numbers<[1], [0], [0], [1], [0, 0, 1, 1], [], []>} : vector<64x32xf32>, vector<32x32xf32>, vector<64x32xf32> -> vector<64x32xf32>
    %c0_11 = arith.constant 0 : index
    %c0_12 = arith.constant 0 : index
    %12 = vector.load %arg5[%c0_11, %c0_12] : memref<1x32xf32, #tpu.memory_space<vmem>>, vector<1x32xf32>
    %13 = vector.broadcast %12 : vector<1x32xf32> to vector<64x32xf32>
    %14 = arith.addf %11, %13 : vector<64x32xf32>
    %cst_13 = arith.constant 0.00999999977 : f32
    %15 = vector.broadcast %cst_13 : f32 to vector<64x32xf32>
    %16 = arith.mulf %15, %14 : vector<64x32xf32>
    %17 = arith.maximumf %14, %16 : vector<64x32xf32>
    %c0_14 = arith.constant 0 : index
    %c0_15 = arith.constant 0 : index
    %18 = vector.load %arg9[%c0_14, %c0_15] : memref<64x32xf32, #tpu.memory_space<vmem>>, vector<64x32xf32>
    tpu.vector_store %arg9[%c0_14, %c0_15], %17 {strides = array<i32>} : memref<64x32xf32, #tpu.memory_space<vmem>>, vector<64x32xf32>,
    %19 = vector.shape_cast %17 : vector<64x32xf32> to vector<8x8x32xf32>
    %cst_16 = arith.constant 0.000000e+00 : f32
    %20 = vector.broadcast %cst_16 : f32 to vector<8x32xf32>
    %21 = vector.extract_strided_slice %19 {offsets = [0, 0, 0], sizes = [8, 1, 32], strides = [1, 1, 1]} : vector<8x8x32xf32> to vector<8x1x32xf32>
    %22 = vector.shape_cast %21 : vector<8x1x32xf32> to vector<8x32xf32>
    %c0_17 = arith.constant 0 : index
    %c0_18 = arith.constant 0 : index
    %c0_19 = arith.constant 0 : index
    %23 = vector.load %arg6[%c0_17, %c0_18, %c0_19] : memref<8x32x32xf32, #tpu.memory_space<vmem>>, vector<1x32x32xf32>
    %24 = vector.shape_cast %23 : vector<1x32x32xf32> to vector<32x32xf32>
    %cst_20 = arith.constant dense<0.000000e+00> : vector<8x32xf32>
    %25 = tpu.matmul %22, %24, %cst_20 {dimension_numbers = #tpu.dot_dimension_numbers<[1], [0], [0], [1], [0, 0, 1, 1], [], []>} : vector<8x32xf32>, vector<32x32xf32>, vector<8x32xf32> -> vector<8x32xf32>
    %26 = arith.addf %20, %25 : vector<8x32xf32>
    %27 = vector.extract_strided_slice %19 {offsets = [0, 1, 0], sizes = [8, 1, 32], strides = [1, 1, 1]} : vector<8x8x32xf32> to vector<8x1x32xf32>
    %28 = vector.shape_cast %27 : vector<8x1x32xf32> to vector<8x32xf32>
    %c1 = arith.constant 1 : index
    %c0_21 = arith.constant 0 : index
    %c0_22 = arith.constant 0 : index
    %29 = vector.load %arg6[%c1, %c0_21, %c0_22] : memref<8x32x32xf32, #tpu.memory_space<vmem>>, vector<1x32x32xf32>
    %30 = vector.shape_cast %29 : vector<1x32x32xf32> to vector<32x32xf32>
    %cst_23 = arith.constant dense<0.000000e+00> : vector<8x32xf32>
    %31 = tpu.matmul %28, %30, %cst_23 {dimension_numbers = #tpu.dot_dimension_numbers<[1], [0], [0], [1], [0, 0, 1, 1], [], []>} : vector<8x32xf32>, vector<32x32xf32>, vector<8x32xf32> -> vector<8x32xf32>
    %32 = arith.addf %26, %31 : vector<8x32xf32>
    %33 = vector.extract_strided_slice %19 {offsets = [0, 2, 0], sizes = [8, 1, 32], strides = [1, 1, 1]} : vector<8x8x32xf32> to vector<8x1x32xf32>
    %34 = vector.shape_cast %33 : vector<8x1x32xf32> to vector<8x32xf32>
    %c2 = arith.constant 2 : index
    %c0_24 = arith.constant 0 : index
    %c0_25 = arith.constant 0 : index
    %35 = vector.load %arg6[%c2, %c0_24, %c0_25] : memref<8x32x32xf32, #tpu.memory_space<vmem>>, vector<1x32x32xf32>
    %36 = vector.shape_cast %35 : vector<1x32x32xf32> to vector<32x32xf32>
    %cst_26 = arith.constant dense<0.000000e+00> : vector<8x32xf32>
    %37 = tpu.matmul %34, %36, %cst_26 {dimension_numbers = #tpu.dot_dimension_numbers<[1], [0], [0], [1], [0, 0, 1, 1], [], []>} : vector<8x32xf32>, vector<32x32xf32>, vector<8x32xf32> -> vector<8x32xf32>
    %38 = arith.addf %32, %37 : vector<8x32xf32>
    %39 = vector.extract_strided_slice %19 {offsets = [0, 3, 0], sizes = [8, 1, 32], strides = [1, 1, 1]} : vector<8x8x32xf32> to vector<8x1x32xf32>
    %40 = vector.shape_cast %39 : vector<8x1x32xf32> to vector<8x32xf32>
    %c3 = arith.constant 3 : index
    %c0_27 = arith.constant 0 : index
    %c0_28 = arith.constant 0 : index
    %41 = vector.load %arg6[%c3, %c0_27, %c0_28] : memref<8x32x32xf32, #tpu.memory_space<vmem>>, vector<1x32x32xf32>
    %42 = vector.shape_cast %41 : vector<1x32x32xf32> to vector<32x32xf32>
    %cst_29 = arith.constant dense<0.000000e+00> : vector<8x32xf32>
    %43 = tpu.matmul %40, %42, %cst_29 {dimension_numbers = #tpu.dot_dimension_numbers<[1], [0], [0], [1], [0, 0, 1, 1], [], []>} : vector<8x32xf32>, vector<32x32xf32>, vector<8x32xf32> -> vector<8x32xf32>
    %44 = arith.addf %38, %43 : vector<8x32xf32>
    %45 = vector.extract_strided_slice %19 {offsets = [0, 4, 0], sizes = [8, 1, 32], strides = [1, 1, 1]} : vector<8x8x32xf32> to vector<8x1x32xf32>
    %46 = vector.shape_cast %45 : vector<8x1x32xf32> to vector<8x32xf32>
    %c4 = arith.constant 4 : index
    %c0_30 = arith.constant 0 : index
    %c0_31 = arith.constant 0 : index
    %47 = vector.load %arg6[%c4, %c0_30, %c0_31] : memref<8x32x32xf32, #tpu.memory_space<vmem>>, vector<1x32x32xf32>
    %48 = vector.shape_cast %47 : vector<1x32x32xf32> to vector<32x32xf32>
    %cst_32 = arith.constant dense<0.000000e+00> : vector<8x32xf32>
    %49 = tpu.matmul %46, %48, %cst_32 {dimension_numbers = #tpu.dot_dimension_numbers<[1], [0], [0], [1], [0, 0, 1, 1], [], []>} : vector<8x32xf32>, vector<32x32xf32>, vector<8x32xf32> -> vector<8x32xf32>
    %50 = arith.addf %44, %49 : vector<8x32xf32>
    %51 = vector.extract_strided_slice %19 {offsets = [0, 5, 0], sizes = [8, 1, 32], strides = [1, 1, 1]} : vector<8x8x32xf32> to vector<8x1x32xf32>
    %52 = vector.shape_cast %51 : vector<8x1x32xf32> to vector<8x32xf32>
    %c5 = arith.constant 5 : index
    %c0_33 = arith.constant 0 : index
    %c0_34 = arith.constant 0 : index
    %53 = vector.load %arg6[%c5, %c0_33, %c0_34] : memref<8x32x32xf32, #tpu.memory_space<vmem>>, vector<1x32x32xf32>
    %54 = vector.shape_cast %53 : vector<1x32x32xf32> to vector<32x32xf32>
    %cst_35 = arith.constant dense<0.000000e+00> : vector<8x32xf32>
    %55 = tpu.matmul %52, %54, %cst_35 {dimension_numbers = #tpu.dot_dimension_numbers<[1], [0], [0], [1], [0, 0, 1, 1], [], []>} : vector<8x32xf32>, vector<32x32xf32>, vector<8x32xf32> -> vector<8x32xf32>
    %56 = arith.addf %50, %55 : vector<8x32xf32>
    %57 = vector.extract_strided_slice %19 {offsets = [0, 6, 0], sizes = [8, 1, 32], strides = [1, 1, 1]} : vector<8x8x32xf32> to vector<8x1x32xf32>
    %58 = vector.shape_cast %57 : vector<8x1x32xf32> to vector<8x32xf32>
    %c6 = arith.constant 6 : index
    %c0_36 = arith.constant 0 : index
    %c0_37 = arith.constant 0 : index
    %59 = vector.load %arg6[%c6, %c0_36, %c0_37] : memref<8x32x32xf32, #tpu.memory_space<vmem>>, vector<1x32x32xf32>
    %60 = vector.shape_cast %59 : vector<1x32x32xf32> to vector<32x32xf32>
    %cst_38 = arith.constant dense<0.000000e+00> : vector<8x32xf32>
    %61 = tpu.matmul %58, %60, %cst_38 {dimension_numbers = #tpu.dot_dimension_numbers<[1], [0], [0], [1], [0, 0, 1, 1], [], []>} : vector<8x32xf32>, vector<32x32xf32>, vector<8x32xf32> -> vector<8x32xf32>
    %62 = arith.addf %56, %61 : vector<8x32xf32>
    %63 = vector.extract_strided_slice %19 {offsets = [0, 7, 0], sizes = [8, 1, 32], strides = [1, 1, 1]} : vector<8x8x32xf32> to vector<8x1x32xf32>
    %64 = vector.shape_cast %63 : vector<8x1x32xf32> to vector<8x32xf32>
    %c7 = arith.constant 7 : index
    %c0_39 = arith.constant 0 : index
    %c0_40 = arith.constant 0 : index
    %65 = vector.load %arg6[%c7, %c0_39, %c0_40] : memref<8x32x32xf32, #tpu.memory_space<vmem>>, vector<1x32x32xf32>
    %66 = vector.shape_cast %65 : vector<1x32x32xf32> to vector<32x32xf32>
    %cst_41 = arith.constant dense<0.000000e+00> : vector<8x32xf32>
    %67 = tpu.matmul %64, %66, %cst_41 {dimension_numbers = #tpu.dot_dimension_numbers<[1], [0], [0], [1], [0, 0, 1, 1], [], []>} : vector<8x32xf32>, vector<32x32xf32>, vector<8x32xf32> -> vector<8x32xf32>
    %68 = arith.addf %62, %67 : vector<8x32xf32>
    %c0_42 = arith.constant 0 : index
    %c0_43 = arith.constant 0 : index
    %69 = vector.load %arg7[%c0_42, %c0_43] : memref<1x32xf32, #tpu.memory_space<vmem>>, vector<1x32xf32>
    %70 = vector.broadcast %69 : vector<1x32xf32> to vector<8x32xf32>
    %71 = arith.addf %68, %70 : vector<8x32xf32>
    %cst_44 = arith.constant 0.000000e+00 : f32
    %72 = vector.broadcast %cst_44 : f32 to vector<8x32xf32>
    %73 = arith.subf %72, %71 : vector<8x32xf32>
    %74 = math.exp %73 : vector<8x32xf32>
    %cst_45 = arith.constant 1.000000e+00 : f32
    %75 = vector.broadcast %cst_45 : f32 to vector<8x32xf32>
    %76 = arith.addf %75, %74 : vector<8x32xf32>
    %77 = tpu.reciprocal %76 : vector<8x32xf32> -> vector<8x32xf32>
    %c0_46 = arith.constant 0 : index
    %c0_47 = arith.constant 0 : index
    %78 = vector.load %arg10[%c0_46, %c0_47] : memref<8x32xf32, #tpu.memory_space<vmem>>, vector<8x32xf32>
    tpu.vector_store %arg10[%c0_46, %c0_47], %77 {strides = array<i32>} : memref<8x32xf32, #tpu.memory_space<vmem>>, vector<8x32xf32>,
    return
  }
  func.func @transform_0(%arg0: i32) -> (i32, i32) {
    %c0_i32 = arith.constant 0 : i32
    %c0_i32_0 = arith.constant 0 : i32
    return %arg0, %c0_i32 : i32, i32
  }
  func.func @transform_1(%arg0: i32) -> (i32, i32) {
    %c0_i32 = arith.constant 0 : i32
    %c0_i32_0 = arith.constant 0 : i32
    %c0_i32_1 = arith.constant 0 : i32
    return %c0_i32, %c0_i32_0 : i32, i32
  }
  func.func @transform_2(%arg0: i32) -> (i32, i32) {
    %c0_i32 = arith.constant 0 : i32
    %c0_i32_0 = arith.constant 0 : i32
    %c0_i32_1 = arith.constant 0 : i32
    return %c0_i32, %c0_i32_0 : i32, i32
  }
  func.func @transform_3(%arg0: i32) -> (i32, i32) {
    %c0_i32 = arith.constant 0 : i32
    %c0_i32_0 = arith.constant 0 : i32
    %c0_i32_1 = arith.constant 0 : i32
    return %c0_i32, %c0_i32_0 : i32, i32
  }
  func.func @transform_4(%arg0: i32) -> (i32, i32) {
    %c0_i32 = arith.constant 0 : i32
    %c0_i32_0 = arith.constant 0 : i32
    %c0_i32_1 = arith.constant 0 : i32
    return %c0_i32, %c0_i32_0 : i32, i32
  }
  func.func @transform_5(%arg0: i32) -> (i32, i32, i32) {
    %c0_i32 = arith.constant 0 : i32
    %c0_i32_0 = arith.constant 0 : i32
    %c0_i32_1 = arith.constant 0 : i32
    %c0_i32_2 = arith.constant 0 : i32
    return %c0_i32, %c0_i32_0, %c0_i32_1 : i32, i32, i32
  }
  func.func @transform_6(%arg0: i32) -> (i32, i32) {
    %c0_i32 = arith.constant 0 : i32
    %c0_i32_0 = arith.constant 0 : i32
    %c0_i32_1 = arith.constant 0 : i32
    return %c0_i32, %c0_i32_0 : i32, i32
  }
  func.func @transform_7(%arg0: i32) -> (i32, i32) {
    %c0_i32 = arith.constant 0 : i32
    %c0_i32_0 = arith.constant 0 : i32
    return %arg0, %c0_i32 : i32, i32
  }
  func.func @transform_8(%arg0: i32) -> (i32, i32) {
    %c0_i32 = arith.constant 0 : i32
    %c0_i32_0 = arith.constant 0 : i32
    return %arg0, %c0_i32 : i32, i32
  }
  func.func @transform_9(%arg0: i32) -> (i32, i32) {
    %c0_i32 = arith.constant 0 : i32
    %c0_i32_0 = arith.constant 0 : i32
    return %arg0, %c0_i32 : i32, i32
  }
}

</mosaic_0001>

<llo_original>
// kernel: tpu_custom_call.1
$region0: #{tpu_custom_call.1}
  #allocation0 [shape = 'u32[]', space=smem, size = 0x4, offset = 0x4, fixed_abs, tag = 'smem constant byte address 0x4 - core index']
  #allocation1 [shape = 'u32[144,128]{1,0:T(1,128)}', space=vmem, size = 0x12000, scoped, tag = 'internal scratch']
  %s0 = inlined_call_operand.vmem [shape: f32[128,16], index: 0, kind: input, shape index: {}]
  %s1 = inlined_call_operand.vmem [shape: f32[16,32], index: 1, kind: input, shape index: {}]
  %s2 = inlined_call_operand.vmem [shape: f32[1,32], index: 2, kind: input, shape index: {}]
  %s3 = inlined_call_operand.vmem [shape: f32[32,32], index: 3, kind: input, shape index: {}]
  %s4 = inlined_call_operand.vmem [shape: f32[1,32], index: 4, kind: input, shape index: {}]
  %s5 = inlined_call_operand.hbm [shape: f32[8,32,32], index: 5, kind: input, shape index: {}]
  %s6 = inlined_call_operand.vmem [shape: f32[1,32], index: 6, kind: input, shape index: {}]
  %s7 = inlined_call_operand.vmem [shape: f32[128,32], index: 7, kind: output, shape index: {0}]
  %s8 = inlined_call_operand.vmem [shape: f32[128,32], index: 8, kind: output, shape index: {1}]
  %s9 = inlined_call_operand.hbm [shape: f32[16,32], index: 9, kind: output, shape index: {2}]
  %10 = xla_tuple %s7, %s8, %s9
  %s11 = sld [smem:[#allocation0]]
  $region81: #{tpu_custom_call.1} parent=0
    _
  %s13 = ssub.s32 1, %s11
  %s14 = scalar_select 0, %s13, %s11
  $region1: #{tpu_custom_call.1} parent=0
    #allocation2 [shape = 'u8[131072]{0}', space=vmem, size = 0x20000, scoped, tag = 'input window, operand 5, single buffered']
    #allocation3 [shape = 's32[2]{0}', space=sflag, size = 0x8, scoped, tag = 'scoped memory for tpu_custom_call.1']
    #allocation4 [shape = 's32[2]{0}', space=sflag, size = 0x8, scoped, tag = 'scoped memory for tpu_custom_call.1']
    #allocation5 [shape = 'u8[8192]{0}', space=vmem, size = 0x2000, scoped, tag = 'output window, operand 2']
    %15 = vsyncpa [#allocation3], 0
    %16 = vsyncpa [#allocation4], 0
    %s17 = scalar_lea.sflag [#allocation4], 1
    %18 = vsyncpa %s17, 0
    loop: start=0, step=1, limit=4
    $region2: #{tpu_custom_call.1} parent=1 // loop_pre_header
      _
    $region3: #{tpu_custom_call.1} parent=1 // loop_header
      %s20 = sphi 0, %s24
      %p21 = scmp.ge.s32.totalorder %s20, 4
      %s30 = sphi 0, %s32
      %s33 = sphi 0, %s30
      %s34 = sphi 0, %s33
      %s50 = sphi 0, %s34
      %s54 = sphi 0, %s54
      %s56 = sphi 0, %s54
      %s57 = sphi 0, %s56
      %s71 = sphi 0, %s57
      %s75 = sphi 0, %s75
      %s77 = sphi 0, %s75
      %s78 = sphi 0, %s77
      %s92 = sphi 0, %s78
      %s96 = sphi 0, %s96
      %s98 = sphi 0, %s96
      %s99 = sphi 0, %s98
      %s113 = sphi 0, %s99
      %s117 = sphi 0, %s117
      %s119 = sphi 0, %s117
      %s120 = sphi 0, %s119
      %s134 = sphi 0, %s120
      %s138 = sphi 0, %s138
      %s140 = sphi 0, %s138
      %s141 = sphi 0, %s140
      %s155 = sphi 0, %s141
      %s159 = sphi 0, %s159
      %s161 = sphi 0, %s159
      %s162 = sphi 0, %s161
      %s176 = sphi 0, %s162
      %s182 = sphi 0, %s184
      %s185 = sphi 0, %s182
      %s186 = sphi 0, %s185
      %s202 = sphi 0, %s186
      %s208 = sphi 0, %s210
      %s211 = sphi 0, %s208
      %s212 = sphi 0, %s211
      %s228 = sphi 0, %s212
      %s234 = sphi 0, %s236
      %s237 = sphi 0, %s234
      %s238 = sphi 0, %s237
      %s254 = sphi 0, %s238
    $region4: #{tpu_custom_call.1} parent=1 // loop_header_branch
      %23 = sbr.rel (%p21) target = $region8
    $region5: #{tpu_custom_call.1} parent=1 // loop_body
      %s25 = ssub.s32 %s20, 1
      %s26 = ssub.s32 %s20, 2
      %s27 = sadd.s32 %s20, 1
      %s28 = ssub.s32 %s20, %s27
      %p29 = scmp.eq.s32.totalorder %s28, 0
      %s31 = sadd.s32 %s30, 1
      %s32 = scalar_select %p29, %s30, %s31
      %p35 = pneg %p29
      %p36 = scmp.eq.s32.totalorder %s20, 1
      %p37 = por %p35, %p36
      %p38 = scmp.ne.s32.totalorder %s30, %s33
      %p39 = scmp.eq.s32.totalorder %s20, 0
      %p40 = por %p38, %p39
      %p41 = scmp.ne.s32.totalorder %s30, %s33
      %p42 = scmp.eq.s32.totalorder %s25, 1
      %p43 = por %p41, %p42
      %p44 = scmp.ne.s32.totalorder %s33, %s34
      %p45 = scmp.eq.s32.totalorder %s25, 0
      %p46 = por %p44, %p45
      %p47 = scmp.ne.s32.totalorder %s33, %s34
      %p48 = scmp.eq.s32.totalorder %s26, 1
      %p49 = por %p47, %p48
      %p51 = scmp.ne.s32.totalorder %s34, %s50
      %p52 = scmp.eq.s32.totalorder %s26, 0
      %p53 = por %p51, %p52
      %s55 = sadd.s32 %s54, 1
      %p58 = scmp.eq.s32.totalorder %s20, 1
      %p59 = scmp.ne.s32.totalorder %s54, %s56
      %p60 = scmp.eq.s32.totalorder %s20, 0
      %p61 = por %p59, %p60
      %p62 = scmp.ne.s32.totalorder %s54, %s56
      %p63 = scmp.eq.s32.totalorder %s25, 1
      %p64 = por %p62, %p63
      %p65 = scmp.ne.s32.totalorder %s56, %s57
      %p66 = scmp.eq.s32.totalorder %s25, 0
      %p67 = por %p65, %p66
      %p68 = scmp.ne.s32.totalorder %s56, %s57
      %p69 = scmp.eq.s32.totalorder %s26, 1
      %p70 = por %p68, %p69
      %p72 = scmp.ne.s32.totalorder %s57, %s71
      %p73 = scmp.eq.s32.totalorder %s26, 0
      %p74 = por %p72, %p73
      %s76 = sadd.s32 %s75, 1
      %p79 = scmp.eq.s32.totalorder %s20, 1
      %p80 = scmp.ne.s32.totalorder %s75, %s77
      %p81 = scmp.eq.s32.totalorder %s20, 0
      %p82 = por %p80, %p81
      %p83 = scmp.ne.s32.totalorder %s75, %s77
      %p84 = scmp.eq.s32.totalorder %s25, 1
      %p85 = por %p83, %p84
      %p86 = scmp.ne.s32.totalorder %s77, %s78
      %p87 = scmp.eq.s32.totalorder %s25, 0
      %p88 = por %p86, %p87
      %p89 = scmp.ne.s32.totalorder %s77, %s78
      %p90 = scmp.eq.s32.totalorder %s26, 1
      %p91 = por %p89, %p90
      %p93 = scmp.ne.s32.totalorder %s78, %s92
      %p94 = scmp.eq.s32.totalorder %s26, 0
      %p95 = por %p93, %p94
      %s97 = sadd.s32 %s96, 1
      %p100 = scmp.eq.s32.totalorder %s20, 1
      %p101 = scmp.ne.s32.totalorder %s96, %s98
      %p102 = scmp.eq.s32.totalorder %s20, 0
      %p103 = por %p101, %p102
      %p104 = scmp.ne.s32.totalorder %s96, %s98
      %p105 = scmp.eq.s32.totalorder %s25, 1
      %p106 = por %p104, %p105
      %p107 = scmp.ne.s32.totalorder %s98, %s99
      %p108 = scmp.eq.s32.totalorder %s25, 0
      %p109 = por %p107, %p108
      %p110 = scmp.ne.s32.totalorder %s98, %s99
      %p111 = scmp.eq.s32.totalorder %s26, 1
      %p112 = por %p110, %p111
      %p114 = scmp.ne.s32.totalorder %s99, %s113
      %p115 = scmp.eq.s32.totalorder %s26, 0
      %p116 = por %p114, %p115
      %s118 = sadd.s32 %s117, 1
      %p121 = scmp.eq.s32.totalorder %s20, 1
      %p122 = scmp.ne.s32.totalorder %s117, %s119
      %p123 = scmp.eq.s32.totalorder %s20, 0
      %p124 = por %p122, %p123
      %p125 = scmp.ne.s32.totalorder %s117, %s119
      %p126 = scmp.eq.s32.totalorder %s25, 1
      %p127 = por %p125, %p126
      %p128 = scmp.ne.s32.totalorder %s119, %s120
      %p129 = scmp.eq.s32.totalorder %s25, 0
      %p130 = por %p128, %p129
      %p131 = scmp.ne.s32.totalorder %s119, %s120
      %p132 = scmp.eq.s32.totalorder %s26, 1
      %p133 = por %p131, %p132
      %p135 = scmp.ne.s32.totalorder %s120, %s134
      %p136 = scmp.eq.s32.totalorder %s26, 0
      %p137 = por %p135, %p136
      %s139 = sadd.s32 %s138, 1
      %p142 = scmp.eq.s32.totalorder %s20, 1
      %p143 = scmp.ne.s32.totalorder %s138, %s140
      %p144 = scmp.eq.s32.totalorder %s20, 0
      %p145 = por %p143, %p144
      %p146 = scmp.ne.s32.totalorder %s138, %s140
      %p147 = scmp.eq.s32.totalorder %s25, 1
      %p148 = por %p146, %p147
      %p149 = scmp.ne.s32.totalorder %s140, %s141
      %p150 = scmp.eq.s32.totalorder %s25, 0
      %p151 = por %p149, %p150
      %p152 = scmp.ne.s32.totalorder %s140, %s141
      %p153 = scmp.eq.s32.totalorder %s26, 1
      %p154 = por %p152, %p153
      %p156 = scmp.ne.s32.totalorder %s141, %s155
      %p157 = scmp.eq.s32.totalorder %s26, 0
      %p158 = por %p156, %p157
      %s160 = sadd.s32 %s159, 1
      %p163 = scmp.eq.s32.totalorder %s20, 1
      %p164 = scmp.ne.s32.totalorder %s159, %s161
      %p165 = scmp.eq.s32.totalorder %s20, 0
      %p166 = por %p164, %p165
      %p167 = scmp.ne.s32.totalorder %s159, %s161
      %p168 = scmp.eq.s32.totalorder %s25, 1
      %p169 = por %p167, %p168
      %p170 = scmp.ne.s32.totalorder %s161, %s162
      %p171 = scmp.eq.s32.totalorder %s25, 0
      %p172 = por %p170, %p171
      %p173 = scmp.ne.s32.totalorder %s161, %s162
      %p174 = scmp.eq.s32.totalorder %s26, 1
      %p175 = por %p173, %p174
      %p177 = scmp.ne.s32.totalorder %s162, %s176
      %p178 = scmp.eq.s32.totalorder %s26, 0
      %p179 = por %p177, %p178
      %s180 = ssub.s32 %s20, %s27
      %p181 = scmp.eq.s32.totalorder %s180, 0
      %s183 = sadd.s32 %s182, 1
      %s184 = scalar_select %p181, %s182, %s183
      %p187 = pneg %p181
      %p188 = scmp.eq.s32.totalorder %s20, 1
      %p189 = por %p187, %p188
      %p190 = scmp.ne.s32.totalorder %s182, %s185
      %p191 = scmp.eq.s32.totalorder %s20, 0
      %p192 = por %p190, %p191
      %p193 = scmp.ne.s32.totalorder %s182, %s185
      %p194 = scmp.eq.s32.totalorder %s25, 1
      %p195 = por %p193, %p194
      %p196 = scmp.ne.s32.totalorder %s185, %s186
      %p197 = scmp.eq.s32.totalorder %s25, 0
      %p198 = por %p196, %p197
      %p199 = scmp.ne.s32.totalorder %s185, %s186
      %p200 = scmp.eq.s32.totalorder %s26, 1
      %p201 = por %p199, %p200
      %p203 = scmp.ne.s32.totalorder %s186, %s202
      %p204 = scmp.eq.s32.totalorder %s26, 0
      %p205 = por %p203, %p204
      %s206 = ssub.s32 %s20, %s27
      %p207 = scmp.eq.s32.totalorder %s206, 0
      %s209 = sadd.s32 %s208, 1
      %s210 = scalar_select %p207, %s208, %s209
      %p213 = pneg %p207
      %p214 = scmp.eq.s32.totalorder %s20, 1
      %p215 = por %p213, %p214
      %p216 = scmp.ne.s32.totalorder %s208, %s211
      %p217 = scmp.eq.s32.totalorder %s20, 0
      %p218 = por %p216, %p217
      %p219 = scmp.ne.s32.totalorder %s208, %s211
      %p220 = scmp.eq.s32.totalorder %s25, 1
      %p221 = por %p219, %p220
      %p222 = scmp.ne.s32.totalorder %s211, %s212
      %p223 = scmp.eq.s32.totalorder %s25, 0
      %p224 = por %p222, %p223
      %p225 = scmp.ne.s32.totalorder %s211, %s212
      %p226 = scmp.eq.s32.totalorder %s26, 1
      %p227 = por %p225, %p226
      %p229 = scmp.ne.s32.totalorder %s212, %s228
      %p230 = scmp.eq.s32.totalorder %s26, 0
      %p231 = por %p229, %p230
      %s232 = ssub.s32 %s20, %s27
      %p233 = scmp.eq.s32.totalorder %s232, 0
      %s235 = sadd.s32 %s234, 1
      %s236 = scalar_select %p233, %s234, %s235
      %p239 = pneg %p233
      %p240 = scmp.eq.s32.totalorder %s20, 1
      %p241 = por %p239, %p240
      %p242 = scmp.ne.s32.totalorder %s234, %s237
      %p243 = scmp.eq.s32.totalorder %s20, 0
      %p244 = por %p242, %p243
      %p245 = scmp.ne.s32.totalorder %s234, %s237
      %p246 = scmp.eq.s32.totalorder %s25, 1
      %p247 = por %p245, %p246
      %p248 = scmp.ne.s32.totalorder %s237, %s238
      %p249 = scmp.eq.s32.totalorder %s25, 0
      %p250 = por %p248, %p249
      %p251 = scmp.ne.s32.totalorder %s237, %s238
      %p252 = scmp.eq.s32.totalorder %s26, 1
      %p253 = por %p251, %p252
      %p255 = scmp.ne.s32.totalorder %s238, %s254
      %p256 = scmp.eq.s32.totalorder %s26, 0
      %p257 = por %p255, %p256
      %p258 = scmp.le.s32.totalorder 1, %s20
      %p259 = scmp.lt.s32.totalorder %s20, 3
      %p260 = pnand %p258, %p259
      %p261 = pneg %p260
      // Predicated region
      $region9: #{tpu_custom_call.1} parent=5 // pred_check
        _
      $region10: #{tpu_custom_call.1} parent=5 // pred_check_branch
        %263 = sbr.rel (%p260) target = $region12
      $region11: #{tpu_custom_call.1} parent=5 // pred_region
        %s264 = ssub.s32 %s20, 1
        // Predicated region
        $region13: #{tpu_custom_call.1} parent=11 // pred_check
          %p265 = pneg %p67
        $region14: #{tpu_custom_call.1} parent=11 // pred_check_branch
          %267 = sbr.rel (%p265) target = $region16
        $region15: #{tpu_custom_call.1} parent=11 // pred_region
          _
        $region16: #{tpu_custom_call.1} parent=11 // pred_fallthru
          _
        // Predicated region
        $region17: #{tpu_custom_call.1} parent=11 // pred_check
          %p268 = pneg %p88
        $region18: #{tpu_custom_call.1} parent=11 // pred_check_branch
          %270 = sbr.rel (%p268) target = $region20
        $region19: #{tpu_custom_call.1} parent=11 // pred_region
          _
        $region20: #{tpu_custom_call.1} parent=11 // pred_fallthru
          _
        // Predicated region
        $region21: #{tpu_custom_call.1} parent=11 // pred_check
          %p271 = pneg %p109
        $region22: #{tpu_custom_call.1} parent=11 // pred_check_branch
          %273 = sbr.rel (%p271) target = $region24
        $region23: #{tpu_custom_call.1} parent=11 // pred_region
          _
        $region24: #{tpu_custom_call.1} parent=11 // pred_fallthru
          _
        // Predicated region
        $region25: #{tpu_custom_call.1} parent=11 // pred_check
          %p274 = pneg %p130
        $region26: #{tpu_custom_call.1} parent=11 // pred_check_branch
          %276 = sbr.rel (%p274) target = $region28
        $region27: #{tpu_custom_call.1} parent=11 // pred_region
          _
        $region28: #{tpu_custom_call.1} parent=11 // pred_fallthru
          _
        // Predicated region
        $region29: #{tpu_custom_call.1} parent=11 // pred_check
          %p277 = pneg %p151
        $region30: #{tpu_custom_call.1} parent=11 // pred_check_branch
          %279 = sbr.rel (%p277) target = $region32
        $region31: #{tpu_custom_call.1} parent=11 // pred_region
          %s281 = ssub.s32 4096, 4096
          %282 = vsyncadd [#allocation3], %s281
          %s283 = sshll.u32 [#allocation2], 4
          %s284 = int_to_ptr.vmem [resolvable:$true] %s283
          %289 = dma.hbm_to_vmem [thread:$0]  %s5, 4096, %s284, [#allocation3], 128, 128, 8
        $region32: #{tpu_custom_call.1} parent=11 // pred_fallthru
          _
        // Predicated region
        $region33: #{tpu_custom_call.1} parent=11 // pred_check
          %p290 = pneg %p172
        $region34: #{tpu_custom_call.1} parent=11 // pred_check_branch
          %292 = sbr.rel (%p290) target = $region36
        $region35: #{tpu_custom_call.1} parent=11 // pred_region
          _
        $region36: #{tpu_custom_call.1} parent=11 // pred_fallthru
          _
      $region12: #{tpu_custom_call.1} parent=5 // pred_fallthru
        _
      %p293 = scmp.lt.s32.totalorder %s20, 2
      // Predicated region
      $region37: #{tpu_custom_call.1} parent=5 // pred_check
        %p294 = pneg %p293
      $region38: #{tpu_custom_call.1} parent=5 // pred_check_branch
        %296 = sbr.rel (%p294) target = $region40
      $region39: #{tpu_custom_call.1} parent=5 // pred_region
        // Predicated region
        $region41: #{tpu_custom_call.1} parent=39 // pred_check
          %p297 = pneg %p40
        $region42: #{tpu_custom_call.1} parent=39 // pred_check_branch
          %299 = sbr.rel (%p297) target = $region44
        $region43: #{tpu_custom_call.1} parent=39 // pred_region
          %s300 = smul.u32 8, %s20
          %p301 = scmp.lt.s32.totalorder %s300, 15
          %s302 = scalar_select %p301, %s300, 15
          %s303 = smul.addr %s302, 8
          %s304 = scalar_lea.vmem %s0, %s303
          %s305 = smul.u32 8, %s20
        $region44: #{tpu_custom_call.1} parent=39 // pred_fallthru
          _
      $region40: #{tpu_custom_call.1} parent=5 // pred_fallthru
        _
      %p306 = scmp.le.s32.totalorder 1, %s20
      %p307 = scmp.lt.s32.totalorder %s20, 3
      %p308 = pnand %p306, %p307
      %p309 = pneg %p308
      // Predicated region
      $region45: #{tpu_custom_call.1} parent=5 // pred_check
        _
      $region46: #{tpu_custom_call.1} parent=5 // pred_check_branch
        %311 = sbr.rel (%p308) target = $region48
      $region47: #{tpu_custom_call.1} parent=5 // pred_region
        %s312 = ssub.s32 %s20, 1
        // Predicated region
        $region49: #{tpu_custom_call.1} parent=47 // pred_check
          %p313 = pneg %p151
        $region50: #{tpu_custom_call.1} parent=47 // pred_check_branch
          %315 = sbr.rel (%p313) target = $region52
        $region51: #{tpu_custom_call.1} parent=47 // pred_region
          %316 = dma.done [#allocation3], 4096
        $region52: #{tpu_custom_call.1} parent=47 // pred_fallthru
          _
        %s317 = smul.u32 8, %s25
        %p318 = scmp.lt.s32.totalorder %s317, 15
        %s319 = scalar_select %p318, %s317, 15
        %s320 = smul.addr %s319, 8
        %s321 = scalar_lea.vmem %s0, %s320
        %p322 = pneg %p46
        %p323 = pneg %p43
        %p324 = pneg %p67
        %p325 = pneg %p64
        %p326 = pneg %p88
        %p327 = pneg %p85
        %p328 = pneg %p109
        %p329 = pneg %p106
        %p330 = pneg %p130
        %p331 = pneg %p127
        %p332 = pneg %p151
        %p333 = pneg %p148
        %p334 = pneg %p172
        %p335 = pneg %p169
        %p336 = pneg %p198
        %p337 = pneg %p195
        %s338 = smul.u32 8, %s25
        %p339 = scmp.lt.s32.totalorder %s338, 15
        %s340 = scalar_select %p339, %s338, 15
        %s341 = smul.addr %s340, 8
        %s342 = scalar_lea.vmem %s7, %s341
        %p343 = pneg %p224
        %p344 = pneg %p221
        %s345 = smul.u32 8, %s25
        %p346 = scmp.lt.s32.totalorder %s345, 15
        %s347 = scalar_select %p346, %s345, 15
        %s348 = smul.addr %s347, 8
        %s349 = scalar_lea.vmem %s8, %s348
        %p350 = pneg %p250
        %p351 = pneg %p247
        %s352 = sand.u32 %s237, 1
        %s353 = scalar_lea.sflag [#allocation4], %s352
        %s354 = sand.u32 %s237, 1
        %s355 = smul.addr %s354, 8
        %s356 = scalar_lea.vmem [#allocation5], %s355
        %s357 = smul.u32 8, %s25
        %p358 = scmp.lt.s32.totalorder %s357, 15
        %s359 = scalar_select %p358, %s357, 15
        %s360 = smul.addr %s359, 8
        %s361 = scalar_lea.vmem %s0, %s360
        %s362 = smul.u32 8, %s25
        %s363 = smul.u32 8, %s25
        %p364 = scmp.lt.s32.totalorder %s363, 15
        %s365 = scalar_select %p364, %s363, 15
        %s366 = smul.addr %s365, 8
        %s367 = scalar_lea.vmem %s7, %s366
        %s368 = smul.u32 8, %s25
        %s369 = smul.u32 8, %s25
        %p370 = scmp.lt.s32.totalorder %s369, 15
        %s371 = scalar_select %p370, %s369, 15
        %s372 = smul.addr %s371, 8
        %s373 = scalar_lea.vmem %s8, %s372
        %s374 = smul.u32 8, %s25
        %v375 = vld [vmem:[%s361] sm:$0xff]
        %v376 = vld [vmem:[%s361 + $0x8] sm:$0xff]
        %v377 = vld [vmem:[%s361 + $0x10] sm:$0xff]
        %v378 = vld [vmem:[%s361 + $0x18] sm:$0xff]
        %v379 = vld [vmem:[%s361 + $0x20] sm:$0xff]
        %v380 = vld [vmem:[%s361 + $0x28] sm:$0xff]
        %v381 = vld [vmem:[%s361 + $0x30] sm:$0xff]
        %v382 = vld [vmem:[%s361 + $0x38] sm:$0xff]
        %v383 = vld [vmem:[%s1] sm:$0xff]
        %v384 = vld [vmem:[%s1 + $0x8] sm:$0xff]
        %v385 = vld [vmem:[%s2] sm:$0x1]
        %v387 = vlaneseq
        %v388 = vshrl.u32 %v387, 7
        %v389 = vsub.s32 0, %v388
        %v390 = vrot.slane %v385, %v389
        %vm392 = vcmask 130048
        %v394 = vsel %vm392, %v375, 0
        %v397 = vsel %vm392, %v376, 0
        %v400 = vsel %vm392, %v377, 0
        %v403 = vsel %vm392, %v378, 0
        %v406 = vsel %vm392, %v379, 0
        %v409 = vsel %vm392, %v380, 0
        %v412 = vsel %vm392, %v381, 0
        %v415 = vsel %vm392, %v382, 0
        %417 = vmatprep.subr.mxu0 0.0
        %418 = vmatpush1.msra.mxu0 %v383
        %419 = vmatprep.subr.mxu0 0.0
        %420 = vmatpush1.msra.mxu0 %v384
        %421 = vmatprep.subr.mxu0 0.0
        %422 = vmatpush1.msra.mxu0 0.0
        %423 = vmatprep.subr.mxu0 0.0
        %424 = vmatpush1.msra.mxu0 0.0
        %425 = vmatprep.subr.mxu0 0.0
        %426 = vmatpush1.msra.mxu0 0.0
        %427 = vmatprep.subr.mxu0 0.0
        %428 = vmatpush1.msra.mxu0 0.0
        %429 = vmatprep.subr.mxu0 0.0
        %430 = vmatpush1.msra.mxu0 0.0
        %431 = vmatprep.subr.mxu0 0.0
        %432 = vmatpush1.msra.mxu0 0.0
        %433 = vmatprep.subr.mxu0 0.0
        %434 = vmatpush1.msra.mxu0 0.0
        %435 = vmatprep.subr.mxu0 0.0
        %436 = vmatpush1.msra.mxu0 0.0
        %437 = vmatprep.subr.mxu0 0.0
        %438 = vmatpush1.msra.mxu0 0.0
        %439 = vmatprep.subr.mxu0 0.0
        %440 = vmatpush1.msra.mxu0 0.0
        %441 = vmatprep.subr.mxu0 0.0
        %442 = vmatpush1.msra.mxu0 0.0
        %443 = vmatprep.subr.mxu0 0.0
        %444 = vmatpush1.msra.mxu0 0.0
        %445 = vmatprep.subr.mxu0 0.0
        %446 = vmatpush1.msra.mxu0 0.0
        %447 = vmatprep.subr.mxu0 0.0
        %448 = vmatpush1.msra.mxu0 0.0
        %449 = vmatprep.subr.mxu0 0.0
        %450 = vmatpush1.msra.mxu0 0.0
        %451 = vmatprep.subr.mxu0 0.0
        %452 = vmatpush1.msra.mxu0 0.0
        %453 = vmatprep.subr.mxu0 0.0
        %454 = vmatpush1.msra.mxu0 0.0
        %455 = vmatprep.subr.mxu0 0.0
        %456 = vmatpush1.msra.mxu0 0.0
        %457 = vmatprep.subr.mxu0 0.0
        %458 = vmatpush1.msra.mxu0 0.0
        %459 = vmatprep.subr.mxu0 0.0
        %460 = vmatpush1.msra.mxu0 0.0
        %461 = vmatprep.subr.mxu0 0.0
        %462 = vmatpush1.msra.mxu0 0.0
        %463 = vmatprep.subr.mxu0 0.0
        %464 = vmatpush1.msra.mxu0 0.0
        %465 = vmatprep.subr.mxu0 0.0
        %466 = vmatpush1.msra.mxu0 0.0
        %467 = vmatprep.subr.mxu0 0.0
        %468 = vmatpush1.msra.mxu0 0.0
        %469 = vmatprep.subr.mxu0 0.0
        %470 = vmatpush1.msra.mxu0 0.0
        %471 = vmatprep.subr.mxu0 0.0
        %472 = vmatpush1.msra.mxu0 0.0
        %473 = vmatprep.subr.mxu0 0.0
        %474 = vmatpush1.msra.mxu0 0.0
        %475 = vmatprep.subr.mxu0 0.0
        %476 = vmatpush1.msra.mxu0 0.0
        %477 = vmatprep.subr.mxu0 0.0
        %478 = vmatpush1.msra.mxu0 0.0
        %479 = vmatprep.subr.mxu0 0.0
        %480 = vmatpush1.msra.mxu0 0.0
        %481 = vmatprep.mubr.f32.mxu0 0.0
        %482 = vmatmul.mubr.f32.gmra.mrb[0].mxu0 %v394
        %v483 = vpop.f32.mrb[0].mxu0
        %v484 = vadd.f32 %v390, %v483
        %v485 = vpop.f32.mrb[0].mxu0
        %486 = vmatprep.mubr.f32.mxu0 0.0
        %487 = vmatmul.mubr.f32.gmra.mrb[0].mxu0 %v397
        %v488 = vpop.f32.mrb[0].mxu0
        %v489 = vadd.f32 %v390, %v488
        %v490 = vpop.f32.mrb[0].mxu0
        %491 = vmatprep.mubr.f32.mxu0 0.0
        %492 = vmatmul.mubr.f32.gmra.mrb[0].mxu0 %v400
        %v493 = vpop.f32.mrb[0].mxu0
        %v494 = vadd.f32 %v390, %v493
        %v495 = vpop.f32.mrb[0].mxu0
        %496 = vmatprep.mubr.f32.mxu0 0.0
        %497 = vmatmul.mubr.f32.gmra.mrb[0].mxu0 %v403
        %v498 = vpop.f32.mrb[0].mxu0
        %v499 = vadd.f32 %v390, %v498
        %v500 = vpop.f32.mrb[0].mxu0
        %501 = vmatprep.mubr.f32.mxu0 0.0
        %502 = vmatmul.mubr.f32.gmra.mrb[0].mxu0 %v406
        %v503 = vpop.f32.mrb[0].mxu0
        %v504 = vadd.f32 %v390, %v503
        %v505 = vpop.f32.mrb[0].mxu0
        %506 = vmatprep.mubr.f32.mxu0 0.0
        %507 = vmatmul.mubr.f32.gmra.mrb[0].mxu0 %v409
        %v508 = vpop.f32.mrb[0].mxu0
        %v509 = vadd.f32 %v390, %v508
        %v510 = vpop.f32.mrb[0].mxu0
        %511 = vmatprep.mubr.f32.mxu0 0.0
        %512 = vmatmul.mubr.f32.gmra.mrb[0].mxu0 %v412
        %v513 = vpop.f32.mrb[0].mxu0
        %v514 = vadd.f32 %v390, %v513
        %v515 = vpop.f32.mrb[0].mxu0
        %516 = vmatprep.mubr.f32.mxu0 0.0
        %517 = vmatmul.mubr.f32.gmra.mrb[0].mxu0 %v415
        %v518 = vpop.f32.mrb[0].mxu0
        %v519 = vadd.f32 %v390, %v518
        %v520 = vpop.f32.mrb[0].mxu0
        %521 = vdwg.mxu0
        %v522 = vmul.f32 %v484, 0.01
        %v523 = vmul.f32 %v489, 0.01
        %v524 = vmul.f32 %v494, 0.01
        %v525 = vmul.f32 %v499, 0.01
        %v526 = vmul.f32 %v504, 0.01
        %v527 = vmul.f32 %v509, 0.01
        %v528 = vmul.f32 %v514, 0.01
        %v529 = vmul.f32 %v519, 0.01
        %v530 = vmax.f32 %v484, %v522
        %v531 = vmax.f32 %v489, %v523
        %v532 = vmax.f32 %v494, %v524
        %v533 = vmax.f32 %v499, %v525
        %v534 = vmax.f32 %v504, %v526
        %v535 = vmax.f32 %v509, %v527
        %v536 = vmax.f32 %v514, %v528
        %v537 = vmax.f32 %v519, %v529
        %vm538 = vcmask 261120
        %539 = vst.msk [vmem:[%s367] sm:$0xff] %vm538, %v530
        %540 = vst.msk [vmem:[%s367 + $0x8] sm:$0xff] %vm538, %v531
        %541 = vst.msk [vmem:[%s367 + $0x10] sm:$0xff] %vm538, %v532
        %542 = vst.msk [vmem:[%s367 + $0x18] sm:$0xff] %vm538, %v533
        %543 = vst.msk [vmem:[%s367 + $0x20] sm:$0xff] %vm538, %v534
        %544 = vst.msk [vmem:[%s367 + $0x28] sm:$0xff] %vm538, %v535
        %545 = vst.msk [vmem:[%s367 + $0x30] sm:$0xff] %vm538, %v536
        %546 = vst.msk [vmem:[%s367 + $0x38] sm:$0xff] %vm538, %v537
        %v547 = vld [vmem:[%s3] sm:$0xff]
        %v548 = vld [vmem:[%s3 + $0x8] sm:$0xff]
        %v549 = vld [vmem:[%s3 + $0x10] sm:$0xff]
        %v550 = vld [vmem:[%s3 + $0x18] sm:$0xff]
        %v551 = vld [vmem:[%s4] sm:$0x1]
        %v553 = vlaneseq
        %v554 = vshrl.u32 %v553, 7
        %v555 = vsub.s32 0, %v554
        %v556 = vrot.slane %v551, %v555
        %v559 = vsel %vm538, %v530, 0
        %v562 = vsel %vm538, %v531, 0
        %v565 = vsel %vm538, %v532, 0
        %v568 = vsel %vm538, %v533, 0
        %v571 = vsel %vm538, %v534, 0
        %v574 = vsel %vm538, %v535, 0
        %v577 = vsel %vm538, %v536, 0
        %v580 = vsel %vm538, %v537, 0
        %582 = vmatprep.subr.mxu0 0.0
        %583 = vmatpush1.msra.mxu0 %v547
        %584 = vmatprep.subr.mxu0 0.0
        %585 = vmatpush1.msra.mxu0 %v548
        %586 = vmatprep.subr.mxu0 0.0
        %587 = vmatpush1.msra.mxu0 %v549
        %588 = vmatprep.subr.mxu0 0.0
        %589 = vmatpush1.msra.mxu0 %v550
        %590 = vmatprep.subr.mxu0 0.0
        %591 = vmatpush1.msra.mxu0 0.0
        %592 = vmatprep.subr.mxu0 0.0
        %593 = vmatpush1.msra.mxu0 0.0
        %594 = vmatprep.subr.mxu0 0.0
        %595 = vmatpush1.msra.mxu0 0.0
        %596 = vmatprep.subr.mxu0 0.0
        %597 = vmatpush1.msra.mxu0 0.0
        %598 = vmatprep.subr.mxu0 0.0
        %599 = vmatpush1.msra.mxu0 0.0
        %600 = vmatprep.subr.mxu0 0.0
        %601 = vmatpush1.msra.mxu0 0.0
        %602 = vmatprep.subr.mxu0 0.0
        %603 = vmatpush1.msra.mxu0 0.0
        %604 = vmatprep.subr.mxu0 0.0
        %605 = vmatpush1.msra.mxu0 0.0
        %606 = vmatprep.subr.mxu0 0.0
        %607 = vmatpush1.msra.mxu0 0.0
        %608 = vmatprep.subr.mxu0 0.0
        %609 = vmatpush1.msra.mxu0 0.0
        %610 = vmatprep.subr.mxu0 0.0
        %611 = vmatpush1.msra.mxu0 0.0
        %612 = vmatprep.subr.mxu0 0.0
        %613 = vmatpush1.msra.mxu0 0.0
        %614 = vmatprep.subr.mxu0 0.0
        %615 = vmatpush1.msra.mxu0 0.0
        %616 = vmatprep.subr.mxu0 0.0
        %617 = vmatpush1.msra.mxu0 0.0
        %618 = vmatprep.subr.mxu0 0.0
        %619 = vmatpush1.msra.mxu0 0.0
        %620 = vmatprep.subr.mxu0 0.0
        %621 = vmatpush1.msra.mxu0 0.0
        %622 = vmatprep.subr.mxu0 0.0
        %623 = vmatpush1.msra.mxu0 0.0
        %624 = vmatprep.subr.mxu0 0.0
        %625 = vmatpush1.msra.mxu0 0.0
        %626 = vmatprep.subr.mxu0 0.0
        %627 = vmatpush1.msra.mxu0 0.0
        %628 = vmatprep.subr.mxu0 0.0
        %629 = vmatpush1.msra.mxu0 0.0
        %630 = vmatprep.subr.mxu0 0.0
        %631 = vmatpush1.msra.mxu0 0.0
        %632 = vmatprep.subr.mxu0 0.0
        %633 = vmatpush1.msra.mxu0 0.0
        %634 = vmatprep.subr.mxu0 0.0
        %635 = vmatpush1.msra.mxu0 0.0
        %636 = vmatprep.subr.mxu0 0.0
        %637 = vmatpush1.msra.mxu0 0.0
        %638 = vmatprep.subr.mxu0 0.0
        %639 = vmatpush1.msra.mxu0 0.0
        %640 = vmatprep.subr.mxu0 0.0
        %641 = vmatpush1.msra.mxu0 0.0
        %642 = vmatprep.subr.mxu0 0.0
        %643 = vmatpush1.msra.mxu0 0.0
        %644 = vmatprep.subr.mxu0 0.0
        %645 = vmatpush1.msra.mxu0 0.0
        %646 = vmatprep.mubr.f32.mxu0 0.0
        %647 = vmatmul.mubr.f32.gmra.mrb[0].mxu0 %v559
        %v648 = vpop.f32.mrb[0].mxu0
        %v649 = vadd.f32 %v556, %v648
        %v650 = vpop.f32.mrb[0].mxu0
        %651 = vmatprep.mubr.f32.mxu0 0.0
        %652 = vmatmul.mubr.f32.gmra.mrb[0].mxu0 %v562
        %v653 = vpop.f32.mrb[0].mxu0
        %v654 = vadd.f32 %v556, %v653
        %v655 = vpop.f32.mrb[0].mxu0
        %656 = vmatprep.mubr.f32.mxu0 0.0
        %657 = vmatmul.mubr.f32.gmra.mrb[0].mxu0 %v565
        %v658 = vpop.f32.mrb[0].mxu0
        %v659 = vadd.f32 %v556, %v658
        %v660 = vpop.f32.mrb[0].mxu0
        %661 = vmatprep.mubr.f32.mxu0 0.0
        %662 = vmatmul.mubr.f32.gmra.mrb[0].mxu0 %v568
        %v663 = vpop.f32.mrb[0].mxu0
        %v664 = vadd.f32 %v556, %v663
        %v665 = vpop.f32.mrb[0].mxu0
        %666 = vmatprep.mubr.f32.mxu0 0.0
        %667 = vmatmul.mubr.f32.gmra.mrb[0].mxu0 %v571
        %v668 = vpop.f32.mrb[0].mxu0
        %v669 = vadd.f32 %v556, %v668
        %v670 = vpop.f32.mrb[0].mxu0
        %671 = vmatprep.mubr.f32.mxu0 0.0
        %672 = vmatmul.mubr.f32.gmra.mrb[0].mxu0 %v574
        %v673 = vpop.f32.mrb[0].mxu0
        %v674 = vadd.f32 %v556, %v673
        %v675 = vpop.f32.mrb[0].mxu0
        %676 = vmatprep.mubr.f32.mxu0 0.0
        %677 = vmatmul.mubr.f32.gmra.mrb[0].mxu0 %v577
        %v678 = vpop.f32.mrb[0].mxu0
        %v679 = vadd.f32 %v556, %v678
        %v680 = vpop.f32.mrb[0].mxu0
        %681 = vmatprep.mubr.f32.mxu0 0.0
        %682 = vmatmul.mubr.f32.gmra.mrb[0].mxu0 %v580
        %v683 = vpop.f32.mrb[0].mxu0
        %v684 = vadd.f32 %v556, %v683
        %v685 = vpop.f32.mrb[0].mxu0
        %686 = vdwg.mxu0
        %v687 = vmul.f32 %v649, 0.01
        %v688 = vmul.f32 %v654, 0.01
        %v689 = vmul.f32 %v659, 0.01
        %v690 = vmul.f32 %v664, 0.01
        %v691 = vmul.f32 %v669, 0.01
        %v692 = vmul.f32 %v674, 0.01
        %v693 = vmul.f32 %v679, 0.01
        %v694 = vmul.f32 %v684, 0.01
        %v695 = vmax.f32 %v649, %v687
        %v696 = vmax.f32 %v654, %v688
        %v697 = vmax.f32 %v659, %v689
        %v698 = vmax.f32 %v664, %v690
        %v699 = vmax.f32 %v669, %v691
        %v700 = vmax.f32 %v674, %v692
        %v701 = vmax.f32 %v679, %v693
        %v702 = vmax.f32 %v684, %v694
        %703 = vst.msk [vmem:[%s373] sm:$0xff] %vm538, %v695
        %704 = vst.msk [vmem:[%s373 + $0x8] sm:$0xff] %vm538, %v696
        %705 = vst.msk [vmem:[%s373 + $0x10] sm:$0xff] %vm538, %v697
        %706 = vst.msk [vmem:[%s373 + $0x18] sm:$0xff] %vm538, %v698
        %707 = vst.msk [vmem:[%s373 + $0x20] sm:$0xff] %vm538, %v699
        %708 = vst.msk [vmem:[%s373 + $0x28] sm:$0xff] %vm538, %v700
        %709 = vst.msk [vmem:[%s373 + $0x30] sm:$0xff] %vm538, %v701
        %710 = vst.msk [vmem:[%s373 + $0x38] sm:$0xff] %vm538, %v702
        %v711 = vld [vmem:[#allocation2] sm:$0xff]
        %v712 = vld [vmem:[#allocation2 + $0x8] sm:$0xff]
        %v713 = vld [vmem:[#allocation2 + $0x10] sm:$0xff]
        %v714 = vld [vmem:[#allocation2 + $0x18] sm:$0xff]
        %s715 = scalar_lea.vmem [#allocation2], 32
        %v716 = vld [vmem:[%s715] sm:$0xff]
        %v717 = vld [vmem:[%s715 + $0x8] sm:$0xff]
        %v718 = vld [vmem:[%s715 + $0x10] sm:$0xff]
        %v719 = vld [vmem:[%s715 + $0x18] sm:$0xff]
        %v728 = vrot.slane %v695, 1
        %vm729 = vcmask 1041409
        %v730 = vsel %vm729, %v696, %v728
        %v731 = vrot.slane %v697, 7
        %vm732 = vcmask 1042434
        %v733 = vsel %vm732, %v731, %v730
        %v734 = vrot.slane %v698, 6
        %vm735 = vcmask 1043459
        %v736 = vsel %vm735, %v734, %v733
        %v737 = vrot.slane %v699, 5
        %vm738 = vcmask 1044484
        %v739 = vsel %vm738, %v737, %v736
        %v740 = vrot.slane %v700, 4
        %vm741 = vcmask 1045509
        %v742 = vsel %vm741, %v740, %v739
        %v743 = vrot.slane %v701, 3
        %vm744 = vcmask 1046534
        %v745 = vsel %vm744, %v743, %v742
        %v746 = vrot.slane %v702, 2
        %vm747 = vcmask 1047559
        %v748 = vsel %vm747, %v746, %v745
        %v749 = vsel %vm538, %v748, 0
        %751 = vmatprep.subr.mxu0 0.0
        %752 = vmatpush1.msra.mxu0 %v716
        %753 = vmatprep.subr.mxu0 0.0
        %754 = vmatpush1.msra.mxu0 %v717
        %755 = vmatprep.subr.mxu0 0.0
        %756 = vmatpush1.msra.mxu0 %v718
        %757 = vmatprep.subr.mxu0 0.0
        %758 = vmatpush1.msra.mxu0 %v719
        %759 = vmatprep.subr.mxu0 0.0
        %760 = vmatpush1.msra.mxu0 0.0
        %761 = vmatprep.subr.mxu0 0.0
        %762 = vmatpush1.msra.mxu0 0.0
        %763 = vmatprep.subr.mxu0 0.0
        %764 = vmatpush1.msra.mxu0 0.0
        %765 = vmatprep.subr.mxu0 0.0
        %766 = vmatpush1.msra.mxu0 0.0
        %767 = vmatprep.subr.mxu0 0.0
        %768 = vmatpush1.msra.mxu0 0.0
        %769 = vmatprep.subr.mxu0 0.0
        %770 = vmatpush1.msra.mxu0 0.0
        %771 = vmatprep.subr.mxu0 0.0
        %772 = vmatpush1.msra.mxu0 0.0
        %773 = vmatprep.subr.mxu0 0.0
        %774 = vmatpush1.msra.mxu0 0.0
        %775 = vmatprep.subr.mxu0 0.0
        %776 = vmatpush1.msra.mxu0 0.0
        %777 = vmatprep.subr.mxu0 0.0
        %778 = vmatpush1.msra.mxu0 0.0
        %779 = vmatprep.subr.mxu0 0.0
        %780 = vmatpush1.msra.mxu0 0.0
        %781 = vmatprep.subr.mxu0 0.0
        %782 = vmatpush1.msra.mxu0 0.0
        %783 = vmatprep.subr.mxu0 0.0
        %784 = vmatpush1.msra.mxu0 0.0
        %785 = vmatprep.subr.mxu0 0.0
        %786 = vmatpush1.msra.mxu0 0.0
        %787 = vmatprep.subr.mxu0 0.0
        %788 = vmatpush1.msra.mxu0 0.0
        %789 = vmatprep.subr.mxu0 0.0
        %790 = vmatpush1.msra.mxu0 0.0
        %791 = vmatprep.subr.mxu0 0.0
        %792 = vmatpush1.msra.mxu0 0.0
        %793 = vmatprep.subr.mxu0 0.0
        %794 = vmatpush1.msra.mxu0 0.0
        %795 = vmatprep.subr.mxu0 0.0
        %796 = vmatpush1.msra.mxu0 0.0
        %797 = vmatprep.subr.mxu0 0.0
        %798 = vmatpush1.msra.mxu0 0.0
        %799 = vmatprep.subr.mxu0 0.0
        %800 = vmatpush1.msra.mxu0 0.0
        %801 = vmatprep.subr.mxu0 0.0
        %802 = vmatpush1.msra.mxu0 0.0
        %803 = vmatprep.subr.mxu0 0.0
        %804 = vmatpush1.msra.mxu0 0.0
        %805 = vmatprep.subr.mxu0 0.0
        %806 = vmatpush1.msra.mxu0 0.0
        %807 = vmatprep.subr.mxu0 0.0
        %808 = vmatpush1.msra.mxu0 0.0
        %809 = vmatprep.subr.mxu0 0.0
        %810 = vmatpush1.msra.mxu0 0.0
        %811 = vmatprep.subr.mxu0 0.0
        %812 = vmatpush1.msra.mxu0 0.0
        %813 = vmatprep.subr.mxu0 0.0
        %814 = vmatpush1.msra.mxu0 0.0
        %815 = vmatprep.mubr.f32.mxu0 0.0
        %816 = vmatmul.mubr.f32.gmra.mrb[0].mxu0 %v749
        %v817 = vpop.f32.mrb[0].mxu0
        %v818 = vadd.f32 0.0, %v817
        %v819 = vpop.f32.mrb[0].mxu0
        %820 = vdwg.mxu0
        %v821 = vrot.slane %v696, 7
        %v822 = vsel %vm729, %v821, %v695
        %v823 = vrot.slane %v697, 6
        %v824 = vsel %vm732, %v823, %v822
        %v825 = vrot.slane %v698, 5
        %v826 = vsel %vm735, %v825, %v824
        %v827 = vrot.slane %v699, 4
        %v828 = vsel %vm738, %v827, %v826
        %v829 = vrot.slane %v700, 3
        %v830 = vsel %vm741, %v829, %v828
        %v831 = vrot.slane %v701, 2
        %v832 = vsel %vm744, %v831, %v830
        %v833 = vrot.slane %v702, 1
        %v834 = vsel %vm747, %v833, %v832
        %v835 = vsel %vm538, %v834, 0
        %837 = vmatprep.subr.mxu0 0.0
        %838 = vmatpush1.msra.mxu0 %v711
        %839 = vmatprep.subr.mxu0 0.0
        %840 = vmatpush1.msra.mxu0 %v712
        %841 = vmatprep.subr.mxu0 0.0
        %842 = vmatpush1.msra.mxu0 %v713
        %843 = vmatprep.subr.mxu0 0.0
        %844 = vmatpush1.msra.mxu0 %v714
        %845 = vmatprep.subr.mxu0 0.0
        %846 = vmatpush1.msra.mxu0 0.0
        %847 = vmatprep.subr.mxu0 0.0
        %848 = vmatpush1.msra.mxu0 0.0
        %849 = vmatprep.subr.mxu0 0.0
        %850 = vmatpush1.msra.mxu0 0.0
        %851 = vmatprep.subr.mxu0 0.0
        %852 = vmatpush1.msra.mxu0 0.0
        %853 = vmatprep.subr.mxu0 0.0
        %854 = vmatpush1.msra.mxu0 0.0
        %855 = vmatprep.subr.mxu0 0.0
        %856 = vmatpush1.msra.mxu0 0.0
        %857 = vmatprep.subr.mxu0 0.0
        %858 = vmatpush1.msra.mxu0 0.0
        %859 = vmatprep.subr.mxu0 0.0
        %860 = vmatpush1.msra.mxu0 0.0
        %861 = vmatprep.subr.mxu0 0.0
        %862 = vmatpush1.msra.mxu0 0.0
        %863 = vmatprep.subr.mxu0 0.0
        %864 = vmatpush1.msra.mxu0 0.0
        %865 = vmatprep.subr.mxu0 0.0
        %866 = vmatpush1.msra.mxu0 0.0
        %867 = vmatprep.subr.mxu0 0.0
        %868 = vmatpush1.msra.mxu0 0.0
        %869 = vmatprep.subr.mxu0 0.0
        %870 = vmatpush1.msra.mxu0 0.0
        %871 = vmatprep.subr.mxu0 0.0
        %872 = vmatpush1.msra.mxu0 0.0
        %873 = vmatprep.subr.mxu0 0.0
        %874 = vmatpush1.msra.mxu0 0.0
        %875 = vmatprep.subr.mxu0 0.0
        %876 = vmatpush1.msra.mxu0 0.0
        %877 = vmatprep.subr.mxu0 0.0
        %878 = vmatpush1.msra.mxu0 0.0
        %879 = vmatprep.subr.mxu0 0.0
        %880 = vmatpush1.msra.mxu0 0.0
        %881 = vmatprep.subr.mxu0 0.0
        %882 = vmatpush1.msra.mxu0 0.0
        %883 = vmatprep.subr.mxu0 0.0
        %884 = vmatpush1.msra.mxu0 0.0
        %885 = vmatprep.subr.mxu0 0.0
        %886 = vmatpush1.msra.mxu0 0.0
        %887 = vmatprep.subr.mxu0 0.0
        %888 = vmatpush1.msra.mxu0 0.0
        %889 = vmatprep.subr.mxu0 0.0
        %890 = vmatpush1.msra.mxu0 0.0
        %891 = vmatprep.subr.mxu0 0.0
        %892 = vmatpush1.msra.mxu0 0.0
        %893 = vmatprep.subr.mxu0 0.0
        %894 = vmatpush1.msra.mxu0 0.0
        %895 = vmatprep.subr.mxu0 0.0
        %896 = vmatpush1.msra.mxu0 0.0
        %897 = vmatprep.subr.mxu0 0.0
        %898 = vmatpush1.msra.mxu0 0.0
        %899 = vmatprep.subr.mxu0 0.0
        %900 = vmatpush1.msra.mxu0 0.0
        %901 = vmatprep.mubr.f32.mxu0 0.0
        %902 = vmatmul.mubr.f32.gmra.mrb[0].mxu0 %v835
        %v903 = vpop.f32.mrb[0].mxu0
        %v904 = vadd.f32 %v818, %v903
        %v905 = vpop.f32.mrb[0].mxu0
        %906 = vdwg.mxu0
        %s907 = scalar_lea.vmem [#allocation2], 64
        %v908 = vld [vmem:[%s907] sm:$0xff]
        %v909 = vld [vmem:[%s907 + $0x8] sm:$0xff]
        %v910 = vld [vmem:[%s907 + $0x10] sm:$0xff]
        %v911 = vld [vmem:[%s907 + $0x18] sm:$0xff]
        %v912 = vrot.slane %v695, 2
        %v913 = vrot.slane %v696, 1
        %v914 = vsel %vm729, %v913, %v912
        %v915 = vsel %vm732, %v697, %v914
        %v916 = vrot.slane %v698, 7
        %v917 = vsel %vm735, %v916, %v915
        %v918 = vrot.slane %v699, 6
        %v919 = vsel %vm738, %v918, %v917
        %v920 = vrot.slane %v700, 5
        %v921 = vsel %vm741, %v920, %v919
        %v922 = vrot.slane %v701, 4
        %v923 = vsel %vm744, %v922, %v921
        %v924 = vrot.slane %v702, 3
        %v925 = vsel %vm747, %v924, %v923
        %v926 = vsel %vm538, %v925, 0
        %928 = vmatprep.subr.mxu0 0.0
        %929 = vmatpush1.msra.mxu0 %v908
        %930 = vmatprep.subr.mxu0 0.0
        %931 = vmatpush1.msra.mxu0 %v909
        %932 = vmatprep.subr.mxu0 0.0
        %933 = vmatpush1.msra.mxu0 %v910
        %934 = vmatprep.subr.mxu0 0.0
        %935 = vmatpush1.msra.mxu0 %v911
        %936 = vmatprep.subr.mxu0 0.0
        %937 = vmatpush1.msra.mxu0 0.0
        %938 = vmatprep.subr.mxu0 0.0
        %939 = vmatpush1.msra.mxu0 0.0
        %940 = vmatprep.subr.mxu0 0.0
        %941 = vmatpush1.msra.mxu0 0.0
        %942 = vmatprep.subr.mxu0 0.0
        %943 = vmatpush1.msra.mxu0 0.0
        %944 = vmatprep.subr.mxu0 0.0
        %945 = vmatpush1.msra.mxu0 0.0
        %946 = vmatprep.subr.mxu0 0.0
        %947 = vmatpush1.msra.mxu0 0.0
        %948 = vmatprep.subr.mxu0 0.0
        %949 = vmatpush1.msra.mxu0 0.0
        %950 = vmatprep.subr.mxu0 0.0
        %951 = vmatpush1.msra.mxu0 0.0
        %952 = vmatprep.subr.mxu0 0.0
        %953 = vmatpush1.msra.mxu0 0.0
        %954 = vmatprep.subr.mxu0 0.0
        %955 = vmatpush1.msra.mxu0 0.0
        %956 = vmatprep.subr.mxu0 0.0
        %957 = vmatpush1.msra.mxu0 0.0
        %958 = vmatprep.subr.mxu0 0.0
        %959 = vmatpush1.msra.mxu0 0.0
        %960 = vmatprep.subr.mxu0 0.0
        %961 = vmatpush1.msra.mxu0 0.0
        %962 = vmatprep.subr.mxu0 0.0
        %963 = vmatpush1.msra.mxu0 0.0
        %964 = vmatprep.subr.mxu0 0.0
        %965 = vmatpush1.msra.mxu0 0.0
        %966 = vmatprep.subr.mxu0 0.0
        %967 = vmatpush1.msra.mxu0 0.0
        %968 = vmatprep.subr.mxu0 0.0
        %969 = vmatpush1.msra.mxu0 0.0
        %970 = vmatprep.subr.mxu0 0.0
        %971 = vmatpush1.msra.mxu0 0.0
        %972 = vmatprep.subr.mxu0 0.0
        %973 = vmatpush1.msra.mxu0 0.0
        %974 = vmatprep.subr.mxu0 0.0
        %975 = vmatpush1.msra.mxu0 0.0
        %976 = vmatprep.subr.mxu0 0.0
        %977 = vmatpush1.msra.mxu0 0.0
        %978 = vmatprep.subr.mxu0 0.0
        %979 = vmatpush1.msra.mxu0 0.0
        %980 = vmatprep.subr.mxu0 0.0
        %981 = vmatpush1.msra.mxu0 0.0
        %982 = vmatprep.subr.mxu0 0.0
        %983 = vmatpush1.msra.mxu0 0.0
        %984 = vmatprep.subr.mxu0 0.0
        %985 = vmatpush1.msra.mxu0 0.0
        %986 = vmatprep.subr.mxu0 0.0
        %987 = vmatpush1.msra.mxu0 0.0
        %988 = vmatprep.subr.mxu0 0.0
        %989 = vmatpush1.msra.mxu0 0.0
        %990 = vmatprep.subr.mxu0 0.0
        %991 = vmatpush1.msra.mxu0 0.0
        %992 = vmatprep.mubr.f32.mxu0 0.0
        %993 = vmatmul.mubr.f32.gmra.mrb[0].mxu0 %v926
        %v994 = vpop.f32.mrb[0].mxu0
        %v995 = vadd.f32 0.0, %v994
        %v996 = vpop.f32.mrb[0].mxu0
        %997 = vdwg.mxu0
        %v998 = vadd.f32 %v904, %v995
        %s999 = scalar_lea.vmem [#allocation2], 96
        %v1000 = vld [vmem:[%s999] sm:$0xff]
        %v1001 = vld [vmem:[%s999 + $0x8] sm:$0xff]
        %v1002 = vld [vmem:[%s999 + $0x10] sm:$0xff]
        %v1003 = vld [vmem:[%s999 + $0x18] sm:$0xff]
        %v1004 = vrot.slane %v695, 3
        %v1005 = vrot.slane %v696, 2
        %v1006 = vsel %vm729, %v1005, %v1004
        %v1007 = vrot.slane %v697, 1
        %v1008 = vsel %vm732, %v1007, %v1006
        %v1009 = vsel %vm735, %v698, %v1008
        %v1010 = vrot.slane %v699, 7
        %v1011 = vsel %vm738, %v1010, %v1009
        %v1012 = vrot.slane %v700, 6
        %v1013 = vsel %vm741, %v1012, %v1011
        %v1014 = vrot.slane %v701, 5
        %v1015 = vsel %vm744, %v1014, %v1013
        %v1016 = vrot.slane %v702, 4
        %v1017 = vsel %vm747, %v1016, %v1015
        %v1018 = vsel %vm538, %v1017, 0
        %1020 = vmatprep.subr.mxu0 0.0
        %1021 = vmatpush1.msra.mxu0 %v1000
        %1022 = vmatprep.subr.mxu0 0.0
        %1023 = vmatpush1.msra.mxu0 %v1001
        %1024 = vmatprep.subr.mxu0 0.0
        %1025 = vmatpush1.msra.mxu0 %v1002
        %1026 = vmatprep.subr.mxu0 0.0
        %1027 = vmatpush1.msra.mxu0 %v1003
        %1028 = vmatprep.subr.mxu0 0.0
        %1029 = vmatpush1.msra.mxu0 0.0
        %1030 = vmatprep.subr.mxu0 0.0
        %1031 = vmatpush1.msra.mxu0 0.0
        %1032 = vmatprep.subr.mxu0 0.0
        %1033 = vmatpush1.msra.mxu0 0.0
        %1034 = vmatprep.subr.mxu0 0.0
        %1035 = vmatpush1.msra.mxu0 0.0
        %1036 = vmatprep.subr.mxu0 0.0
        %1037 = vmatpush1.msra.mxu0 0.0
        %1038 = vmatprep.subr.mxu0 0.0
        %1039 = vmatpush1.msra.mxu0 0.0
        %1040 = vmatprep.subr.mxu0 0.0
        %1041 = vmatpush1.msra.mxu0 0.0
        %1042 = vmatprep.subr.mxu0 0.0
        %1043 = vmatpush1.msra.mxu0 0.0
        %1044 = vmatprep.subr.mxu0 0.0
        %1045 = vmatpush1.msra.mxu0 0.0
        %1046 = vmatprep.subr.mxu0 0.0
        %1047 = vmatpush1.msra.mxu0 0.0
        %1048 = vmatprep.subr.mxu0 0.0
        %1049 = vmatpush1.msra.mxu0 0.0
        %1050 = vmatprep.subr.mxu0 0.0
        %1051 = vmatpush1.msra.mxu0 0.0
        %1052 = vmatprep.subr.mxu0 0.0
        %1053 = vmatpush1.msra.mxu0 0.0
        %1054 = vmatprep.subr.mxu0 0.0
        %1055 = vmatpush1.msra.mxu0 0.0
        %1056 = vmatprep.subr.mxu0 0.0
        %1057 = vmatpush1.msra.mxu0 0.0
        %1058 = vmatprep.subr.mxu0 0.0
        %1059 = vmatpush1.msra.mxu0 0.0
        %1060 = vmatprep.subr.mxu0 0.0
        %1061 = vmatpush1.msra.mxu0 0.0
        %1062 = vmatprep.subr.mxu0 0.0
        %1063 = vmatpush1.msra.mxu0 0.0
        %1064 = vmatprep.subr.mxu0 0.0
        %1065 = vmatpush1.msra.mxu0 0.0
        %1066 = vmatprep.subr.mxu0 0.0
        %1067 = vmatpush1.msra.mxu0 0.0
        %1068 = vmatprep.subr.mxu0 0.0
        %1069 = vmatpush1.msra.mxu0 0.0
        %1070 = vmatprep.subr.mxu0 0.0
        %1071 = vmatpush1.msra.mxu0 0.0
        %1072 = vmatprep.subr.mxu0 0.0
        %1073 = vmatpush1.msra.mxu0 0.0
        %1074 = vmatprep.subr.mxu0 0.0
        %1075 = vmatpush1.msra.mxu0 0.0
        %1076 = vmatprep.subr.mxu0 0.0
        %1077 = vmatpush1.msra.mxu0 0.0
        %1078 = vmatprep.subr.mxu0 0.0
        %1079 = vmatpush1.msra.mxu0 0.0
        %1080 = vmatprep.subr.mxu0 0.0
        %1081 = vmatpush1.msra.mxu0 0.0
        %1082 = vmatprep.subr.mxu0 0.0
        %1083 = vmatpush1.msra.mxu0 0.0
        %1084 = vmatprep.mubr.f32.mxu0 0.0
        %1085 = vmatmul.mubr.f32.gmra.mrb[0].mxu0 %v1018
        %v1086 = vpop.f32.mrb[0].mxu0
        %v1087 = vadd.f32 0.0, %v1086
        %v1088 = vpop.f32.mrb[0].mxu0
        %1089 = vdwg.mxu0
        %v1090 = vadd.f32 %v998, %v1087
        %s1091 = scalar_lea.vmem [#allocation2], 128
        %v1092 = vld [vmem:[%s1091] sm:$0xff]
        %v1093 = vld [vmem:[%s1091 + $0x8] sm:$0xff]
        %v1094 = vld [vmem:[%s1091 + $0x10] sm:$0xff]
        %v1095 = vld [vmem:[%s1091 + $0x18] sm:$0xff]
        %v1096 = vrot.slane %v695, 4
        %v1097 = vrot.slane %v696, 3
        %v1098 = vsel %vm729, %v1097, %v1096
        %v1099 = vrot.slane %v697, 2
        %v1100 = vsel %vm732, %v1099, %v1098
        %v1101 = vrot.slane %v698, 1
        %v1102 = vsel %vm735, %v1101, %v1100
        %v1103 = vsel %vm738, %v699, %v1102
        %v1104 = vrot.slane %v700, 7
        %v1105 = vsel %vm741, %v1104, %v1103
        %v1106 = vrot.slane %v701, 6
        %v1107 = vsel %vm744, %v1106, %v1105
        %v1108 = vrot.slane %v702, 5
        %v1109 = vsel %vm747, %v1108, %v1107
        %v1110 = vsel %vm538, %v1109, 0
        %1112 = vmatprep.subr.mxu0 0.0
        %1113 = vmatpush1.msra.mxu0 %v1092
        %1114 = vmatprep.subr.mxu0 0.0
        %1115 = vmatpush1.msra.mxu0 %v1093
        %1116 = vmatprep.subr.mxu0 0.0
        %1117 = vmatpush1.msra.mxu0 %v1094
        %1118 = vmatprep.subr.mxu0 0.0
        %1119 = vmatpush1.msra.mxu0 %v1095
        %1120 = vmatprep.subr.mxu0 0.0
        %1121 = vmatpush1.msra.mxu0 0.0
        %1122 = vmatprep.subr.mxu0 0.0
        %1123 = vmatpush1.msra.mxu0 0.0
        %1124 = vmatprep.subr.mxu0 0.0
        %1125 = vmatpush1.msra.mxu0 0.0
        %1126 = vmatprep.subr.mxu0 0.0
        %1127 = vmatpush1.msra.mxu0 0.0
        %1128 = vmatprep.subr.mxu0 0.0
        %1129 = vmatpush1.msra.mxu0 0.0
        %1130 = vmatprep.subr.mxu0 0.0
        %1131 = vmatpush1.msra.mxu0 0.0
        %1132 = vmatprep.subr.mxu0 0.0
        %1133 = vmatpush1.msra.mxu0 0.0
        %1134 = vmatprep.subr.mxu0 0.0
        %1135 = vmatpush1.msra.mxu0 0.0
        %1136 = vmatprep.subr.mxu0 0.0
        %1137 = vmatpush1.msra.mxu0 0.0
        %1138 = vmatprep.subr.mxu0 0.0
        %1139 = vmatpush1.msra.mxu0 0.0
        %1140 = vmatprep.subr.mxu0 0.0
        %1141 = vmatpush1.msra.mxu0 0.0
        %1142 = vmatprep.subr.mxu0 0.0
        %1143 = vmatpush1.msra.mxu0 0.0
        %1144 = vmatprep.subr.mxu0 0.0
        %1145 = vmatpush1.msra.mxu0 0.0
        %1146 = vmatprep.subr.mxu0 0.0
        %1147 = vmatpush1.msra.mxu0 0.0
        %1148 = vmatprep.subr.mxu0 0.0
        %1149 = vmatpush1.msra.mxu0 0.0
        %1150 = vmatprep.subr.mxu0 0.0
        %1151 = vmatpush1.msra.mxu0 0.0
        %1152 = vmatprep.subr.mxu0 0.0
        %1153 = vmatpush1.msra.mxu0 0.0
        %1154 = vmatprep.subr.mxu0 0.0
        %1155 = vmatpush1.msra.mxu0 0.0
        %1156 = vmatprep.subr.mxu0 0.0
        %1157 = vmatpush1.msra.mxu0 0.0
        %1158 = vmatprep.subr.mxu0 0.0
        %1159 = vmatpush1.msra.mxu0 0.0
        %1160 = vmatprep.subr.mxu0 0.0
        %1161 = vmatpush1.msra.mxu0 0.0
        %1162 = vmatprep.subr.mxu0 0.0
        %1163 = vmatpush1.msra.mxu0 0.0
        %1164 = vmatprep.subr.mxu0 0.0
        %1165 = vmatpush1.msra.mxu0 0.0
        %1166 = vmatprep.subr.mxu0 0.0
        %1167 = vmatpush1.msra.mxu0 0.0
        %1168 = vmatprep.subr.mxu0 0.0
        %1169 = vmatpush1.msra.mxu0 0.0
        %1170 = vmatprep.subr.mxu0 0.0
        %1171 = vmatpush1.msra.mxu0 0.0
        %1172 = vmatprep.subr.mxu0 0.0
        %1173 = vmatpush1.msra.mxu0 0.0
        %1174 = vmatprep.subr.mxu0 0.0
        %1175 = vmatpush1.msra.mxu0 0.0
        %1176 = vmatprep.mubr.f32.mxu0 0.0
        %1177 = vmatmul.mubr.f32.gmra.mrb[0].mxu0 %v1110
        %v1178 = vpop.f32.mrb[0].mxu0
        %v1179 = vadd.f32 0.0, %v1178
        %v1180 = vpop.f32.mrb[0].mxu0
        %1181 = vdwg.mxu0
        %v1182 = vadd.f32 %v1090, %v1179
        %s1183 = scalar_lea.vmem [#allocation2], 160
        %v1184 = vld [vmem:[%s1183] sm:$0xff]
        %v1185 = vld [vmem:[%s1183 + $0x8] sm:$0xff]
        %v1186 = vld [vmem:[%s1183 + $0x10] sm:$0xff]
        %v1187 = vld [vmem:[%s1183 + $0x18] sm:$0xff]
        %v1188 = vrot.slane %v695, 5
        %v1189 = vrot.slane %v696, 4
        %v1190 = vsel %vm729, %v1189, %v1188
        %v1191 = vrot.slane %v697, 3
        %v1192 = vsel %vm732, %v1191, %v1190
        %v1193 = vrot.slane %v698, 2
        %v1194 = vsel %vm735, %v1193, %v1192
        %v1195 = vrot.slane %v699, 1
        %v1196 = vsel %vm738, %v1195, %v1194
        %v1197 = vsel %vm741, %v700, %v1196
        %v1198 = vrot.slane %v701, 7
        %v1199 = vsel %vm744, %v1198, %v1197
        %v1200 = vrot.slane %v702, 6
        %v1201 = vsel %vm747, %v1200, %v1199
        %v1202 = vsel %vm538, %v1201, 0
        %1204 = vmatprep.subr.mxu0 0.0
        %1205 = vmatpush1.msra.mxu0 %v1184
        %1206 = vmatprep.subr.mxu0 0.0
        %1207 = vmatpush1.msra.mxu0 %v1185
        %1208 = vmatprep.subr.mxu0 0.0
        %1209 = vmatpush1.msra.mxu0 %v1186
        %1210 = vmatprep.subr.mxu0 0.0
        %1211 = vmatpush1.msra.mxu0 %v1187
        %1212 = vmatprep.subr.mxu0 0.0
        %1213 = vmatpush1.msra.mxu0 0.0
        %1214 = vmatprep.subr.mxu0 0.0
        %1215 = vmatpush1.msra.mxu0 0.0
        %1216 = vmatprep.subr.mxu0 0.0
        %1217 = vmatpush1.msra.mxu0 0.0
        %1218 = vmatprep.subr.mxu0 0.0
        %1219 = vmatpush1.msra.mxu0 0.0
        %1220 = vmatprep.subr.mxu0 0.0
        %1221 = vmatpush1.msra.mxu0 0.0
        %1222 = vmatprep.subr.mxu0 0.0
        %1223 = vmatpush1.msra.mxu0 0.0
        %1224 = vmatprep.subr.mxu0 0.0
        %1225 = vmatpush1.msra.mxu0 0.0
        %1226 = vmatprep.subr.mxu0 0.0
        %1227 = vmatpush1.msra.mxu0 0.0
        %1228 = vmatprep.subr.mxu0 0.0
        %1229 = vmatpush1.msra.mxu0 0.0
        %1230 = vmatprep.subr.mxu0 0.0
        %1231 = vmatpush1.msra.mxu0 0.0
        %1232 = vmatprep.subr.mxu0 0.0
        %1233 = vmatpush1.msra.mxu0 0.0
        %1234 = vmatprep.subr.mxu0 0.0
        %1235 = vmatpush1.msra.mxu0 0.0
        %1236 = vmatprep.subr.mxu0 0.0
        %1237 = vmatpush1.msra.mxu0 0.0
        %1238 = vmatprep.subr.mxu0 0.0
        %1239 = vmatpush1.msra.mxu0 0.0
        %1240 = vmatprep.subr.mxu0 0.0
        %1241 = vmatpush1.msra.mxu0 0.0
        %1242 = vmatprep.subr.mxu0 0.0
        %1243 = vmatpush1.msra.mxu0 0.0
        %1244 = vmatprep.subr.mxu0 0.0
        %1245 = vmatpush1.msra.mxu0 0.0
        %1246 = vmatprep.subr.mxu0 0.0
        %1247 = vmatpush1.msra.mxu0 0.0
        %1248 = vmatprep.subr.mxu0 0.0
        %1249 = vmatpush1.msra.mxu0 0.0
        %1250 = vmatprep.subr.mxu0 0.0
        %1251 = vmatpush1.msra.mxu0 0.0
        %1252 = vmatprep.subr.mxu0 0.0
        %1253 = vmatpush1.msra.mxu0 0.0
        %1254 = vmatprep.subr.mxu0 0.0
        %1255 = vmatpush1.msra.mxu0 0.0
        %1256 = vmatprep.subr.mxu0 0.0
        %1257 = vmatpush1.msra.mxu0 0.0
        %1258 = vmatprep.subr.mxu0 0.0
        %1259 = vmatpush1.msra.mxu0 0.0
        %1260 = vmatprep.subr.mxu0 0.0
        %1261 = vmatpush1.msra.mxu0 0.0
        %1262 = vmatprep.subr.mxu0 0.0
        %1263 = vmatpush1.msra.mxu0 0.0
        %1264 = vmatprep.subr.mxu0 0.0
        %1265 = vmatpush1.msra.mxu0 0.0
        %1266 = vmatprep.subr.mxu0 0.0
        %1267 = vmatpush1.msra.mxu0 0.0
        %1268 = vmatprep.mubr.f32.mxu0 0.0
        %1269 = vmatmul.mubr.f32.gmra.mrb[0].mxu0 %v1202
        %v1270 = vpop.f32.mrb[0].mxu0
        %v1271 = vadd.f32 0.0, %v1270
        %v1272 = vpop.f32.mrb[0].mxu0
        %1273 = vdwg.mxu0
        %v1274 = vadd.f32 %v1182, %v1271
        %s1275 = scalar_lea.vmem [#allocation2], 192
        %v1276 = vld [vmem:[%s1275] sm:$0xff]
        %v1277 = vld [vmem:[%s1275 + $0x8] sm:$0xff]
        %v1278 = vld [vmem:[%s1275 + $0x10] sm:$0xff]
        %v1279 = vld [vmem:[%s1275 + $0x18] sm:$0xff]
        %v1280 = vrot.slane %v695, 6
        %v1281 = vrot.slane %v696, 5
        %v1282 = vsel %vm729, %v1281, %v1280
        %v1283 = vrot.slane %v697, 4
        %v1284 = vsel %vm732, %v1283, %v1282
        %v1285 = vrot.slane %v698, 3
        %v1286 = vsel %vm735, %v1285, %v1284
        %v1287 = vrot.slane %v699, 2
        %v1288 = vsel %vm738, %v1287, %v1286
        %v1289 = vrot.slane %v700, 1
        %v1290 = vsel %vm741, %v1289, %v1288
        %v1291 = vsel %vm744, %v701, %v1290
        %v1292 = vrot.slane %v702, 7
        %v1293 = vsel %vm747, %v1292, %v1291
        %v1294 = vsel %vm538, %v1293, 0
        %1296 = vmatprep.subr.mxu0 0.0
        %1297 = vmatpush1.msra.mxu0 %v1276
        %1298 = vmatprep.subr.mxu0 0.0
        %1299 = vmatpush1.msra.mxu0 %v1277
        %1300 = vmatprep.subr.mxu0 0.0
        %1301 = vmatpush1.msra.mxu0 %v1278
        %1302 = vmatprep.subr.mxu0 0.0
        %1303 = vmatpush1.msra.mxu0 %v1279
        %1304 = vmatprep.subr.mxu0 0.0
        %1305 = vmatpush1.msra.mxu0 0.0
        %1306 = vmatprep.subr.mxu0 0.0
        %1307 = vmatpush1.msra.mxu0 0.0
        %1308 = vmatprep.subr.mxu0 0.0
        %1309 = vmatpush1.msra.mxu0 0.0
        %1310 = vmatprep.subr.mxu0 0.0
        %1311 = vmatpush1.msra.mxu0 0.0
        %1312 = vmatprep.subr.mxu0 0.0
        %1313 = vmatpush1.msra.mxu0 0.0
        %1314 = vmatprep.subr.mxu0 0.0
        %1315 = vmatpush1.msra.mxu0 0.0
        %1316 = vmatprep.subr.mxu0 0.0
        %1317 = vmatpush1.msra.mxu0 0.0
        %1318 = vmatprep.subr.mxu0 0.0
        %1319 = vmatpush1.msra.mxu0 0.0
        %1320 = vmatprep.subr.mxu0 0.0
        %1321 = vmatpush1.msra.mxu0 0.0
        %1322 = vmatprep.subr.mxu0 0.0
        %1323 = vmatpush1.msra.mxu0 0.0
        %1324 = vmatprep.subr.mxu0 0.0
        %1325 = vmatpush1.msra.mxu0 0.0
        %1326 = vmatprep.subr.mxu0 0.0
        %1327 = vmatpush1.msra.mxu0 0.0
        %1328 = vmatprep.subr.mxu0 0.0
        %1329 = vmatpush1.msra.mxu0 0.0
        %1330 = vmatprep.subr.mxu0 0.0
        %1331 = vmatpush1.msra.mxu0 0.0
        %1332 = vmatprep.subr.mxu0 0.0
        %1333 = vmatpush1.msra.mxu0 0.0
        %1334 = vmatprep.subr.mxu0 0.0
        %1335 = vmatpush1.msra.mxu0 0.0
        %1336 = vmatprep.subr.mxu0 0.0
        %1337 = vmatpush1.msra.mxu0 0.0
        %1338 = vmatprep.subr.mxu0 0.0
        %1339 = vmatpush1.msra.mxu0 0.0
        %1340 = vmatprep.subr.mxu0 0.0
        %1341 = vmatpush1.msra.mxu0 0.0
        %1342 = vmatprep.subr.mxu0 0.0
        %1343 = vmatpush1.msra.mxu0 0.0
        %1344 = vmatprep.subr.mxu0 0.0
        %1345 = vmatpush1.msra.mxu0 0.0
        %1346 = vmatprep.subr.mxu0 0.0
        %1347 = vmatpush1.msra.mxu0 0.0
        %1348 = vmatprep.subr.mxu0 0.0
        %1349 = vmatpush1.msra.mxu0 0.0
        %1350 = vmatprep.subr.mxu0 0.0
        %1351 = vmatpush1.msra.mxu0 0.0
        %1352 = vmatprep.subr.mxu0 0.0
        %1353 = vmatpush1.msra.mxu0 0.0
        %1354 = vmatprep.subr.mxu0 0.0
        %1355 = vmatpush1.msra.mxu0 0.0
        %1356 = vmatprep.subr.mxu0 0.0
        %1357 = vmatpush1.msra.mxu0 0.0
        %1358 = vmatprep.subr.mxu0 0.0
        %1359 = vmatpush1.msra.mxu0 0.0
        %1360 = vmatprep.mubr.f32.mxu0 0.0
        %1361 = vmatmul.mubr.f32.gmra.mrb[0].mxu0 %v1294
        %v1362 = vpop.f32.mrb[0].mxu0
        %v1363 = vadd.f32 0.0, %v1362
        %v1364 = vpop.f32.mrb[0].mxu0
        %1365 = vdwg.mxu0
        %v1366 = vadd.f32 %v1274, %v1363
        %s1367 = scalar_lea.vmem [#allocation2], 224
        %v1368 = vld [vmem:[%s1367] sm:$0xff]
        %v1369 = vld [vmem:[%s1367 + $0x8] sm:$0xff]
        %v1370 = vld [vmem:[%s1367 + $0x10] sm:$0xff]
        %v1371 = vld [vmem:[%s1367 + $0x18] sm:$0xff]
        %v1372 = vrot.slane %v695, 7
        %v1373 = vrot.slane %v696, 6
        %v1374 = vsel %vm729, %v1373, %v1372
        %v1375 = vrot.slane %v697, 5
        %v1376 = vsel %vm732, %v1375, %v1374
        %v1377 = vrot.slane %v698, 4
        %v1378 = vsel %vm735, %v1377, %v1376
        %v1379 = vrot.slane %v699, 3
        %v1380 = vsel %vm738, %v1379, %v1378
        %v1381 = vrot.slane %v700, 2
        %v1382 = vsel %vm741, %v1381, %v1380
        %v1383 = vrot.slane %v701, 1
        %v1384 = vsel %vm744, %v1383, %v1382
        %v1385 = vsel %vm747, %v702, %v1384
        %v1386 = vsel %vm538, %v1385, 0
        %1388 = vmatprep.subr.mxu0 0.0
        %1389 = vmatpush1.msra.mxu0 %v1368
        %1390 = vmatprep.subr.mxu0 0.0
        %1391 = vmatpush1.msra.mxu0 %v1369
        %1392 = vmatprep.subr.mxu0 0.0
        %1393 = vmatpush1.msra.mxu0 %v1370
        %1394 = vmatprep.subr.mxu0 0.0
        %1395 = vmatpush1.msra.mxu0 %v1371
        %1396 = vmatprep.subr.mxu0 0.0
        %1397 = vmatpush1.msra.mxu0 0.0
        %1398 = vmatprep.subr.mxu0 0.0
        %1399 = vmatpush1.msra.mxu0 0.0
        %1400 = vmatprep.subr.mxu0 0.0
        %1401 = vmatpush1.msra.mxu0 0.0
        %1402 = vmatprep.subr.mxu0 0.0
        %1403 = vmatpush1.msra.mxu0 0.0
        %1404 = vmatprep.subr.mxu0 0.0
        %1405 = vmatpush1.msra.mxu0 0.0
        %1406 = vmatprep.subr.mxu0 0.0
        %1407 = vmatpush1.msra.mxu0 0.0
        %1408 = vmatprep.subr.mxu0 0.0
        %1409 = vmatpush1.msra.mxu0 0.0
        %1410 = vmatprep.subr.mxu0 0.0
        %1411 = vmatpush1.msra.mxu0 0.0
        %1412 = vmatprep.subr.mxu0 0.0
        %1413 = vmatpush1.msra.mxu0 0.0
        %1414 = vmatprep.subr.mxu0 0.0
        %1415 = vmatpush1.msra.mxu0 0.0
        %1416 = vmatprep.subr.mxu0 0.0
        %1417 = vmatpush1.msra.mxu0 0.0
        %1418 = vmatprep.subr.mxu0 0.0
        %1419 = vmatpush1.msra.mxu0 0.0
        %1420 = vmatprep.subr.mxu0 0.0
        %1421 = vmatpush1.msra.mxu0 0.0
        %1422 = vmatprep.subr.mxu0 0.0
        %1423 = vmatpush1.msra.mxu0 0.0
        %1424 = vmatprep.subr.mxu0 0.0
        %1425 = vmatpush1.msra.mxu0 0.0
        %1426 = vmatprep.subr.mxu0 0.0
        %1427 = vmatpush1.msra.mxu0 0.0
        %1428 = vmatprep.subr.mxu0 0.0
        %1429 = vmatpush1.msra.mxu0 0.0
        %1430 = vmatprep.subr.mxu0 0.0
        %1431 = vmatpush1.msra.mxu0 0.0
        %1432 = vmatprep.subr.mxu0 0.0
        %1433 = vmatpush1.msra.mxu0 0.0
        %1434 = vmatprep.subr.mxu0 0.0
        %1435 = vmatpush1.msra.mxu0 0.0
        %1436 = vmatprep.subr.mxu0 0.0
        %1437 = vmatpush1.msra.mxu0 0.0
        %1438 = vmatprep.subr.mxu0 0.0
        %1439 = vmatpush1.msra.mxu0 0.0
        %1440 = vmatprep.subr.mxu0 0.0
        %1441 = vmatpush1.msra.mxu0 0.0
        %1442 = vmatprep.subr.mxu0 0.0
        %1443 = vmatpush1.msra.mxu0 0.0
        %1444 = vmatprep.subr.mxu0 0.0
        %1445 = vmatpush1.msra.mxu0 0.0
        %1446 = vmatprep.subr.mxu0 0.0
        %1447 = vmatpush1.msra.mxu0 0.0
        %1448 = vmatprep.subr.mxu0 0.0
        %1449 = vmatpush1.msra.mxu0 0.0
        %1450 = vmatprep.subr.mxu0 0.0
        %1451 = vmatpush1.msra.mxu0 0.0
        %1452 = vmatprep.mubr.f32.mxu0 0.0
        %1453 = vmatmul.mubr.f32.gmra.mrb[0].mxu0 %v1386
        %v1454 = vpop.f32.mrb[0].mxu0
        %v1455 = vadd.f32 0.0, %v1454
        %v1456 = vpop.f32.mrb[0].mxu0
        %1457 = vdwg.mxu0
        %v1458 = vadd.f32 %v1366, %v1455
        %v1459 = vld [vmem:[%s6] sm:$0x1]
        %v1461 = vlaneseq
        %v1462 = vshrl.u32 %v1461, 7
        %v1463 = vsub.s32 0, %v1462
        %v1464 = vrot.slane %v1459, %v1463
        %v1466 = vadd.f32 %v1458, %v1464
        %v1467 = vsub.f32 0.0, %v1466
        %v1468 = vmul.f32 %v1467, 1.442695
        %v1469 = vpow.pop %v1468
        %v1470 = vadd.f32 %v1469, 1.0
        %v1471 = vrcp.pop %v1470
        %1472 = vst.msk [vmem:[%s356] sm:$0xff] %vm538, %v1471
        %s1473 = smul.u32 8, %s25
        %p1474 = scmp.lt.s32.totalorder %s1473, 15
        %s1475 = scalar_select %p1474, %s1473, 15
        %s1476 = smul.addr %s1475, 8
        %s1477 = scalar_lea.vmem %s7, %s1476
        %s1478 = smul.u32 8, %s25
        %p1479 = scmp.lt.s32.totalorder %s1478, 15
        %s1480 = scalar_select %p1479, %s1478, 15
        %s1481 = smul.addr %s1480, 8
        %s1482 = scalar_lea.vmem %s8, %s1481
        %s1483 = sand.u32 %s237, 1
        %s1484 = scalar_lea.sflag [#allocation4], %s1483
        %s1485 = sand.u32 %s237, 1
        %s1486 = smul.addr %s1485, 8
        %s1487 = scalar_lea.vmem [#allocation5], %s1486
        // Predicated region
        $region53: #{tpu_custom_call.1} parent=47 // pred_check
          %p1488 = pneg %p195
        $region54: #{tpu_custom_call.1} parent=47 // pred_check_branch
          %1490 = sbr.rel (%p1488) target = $region56
        $region55: #{tpu_custom_call.1} parent=47 // pred_region
          %s1491 = smul.u32 8, %s25
        $region56: #{tpu_custom_call.1} parent=47 // pred_fallthru
          _
        // Predicated region
        $region57: #{tpu_custom_call.1} parent=47 // pred_check
          %p1492 = pneg %p221
        $region58: #{tpu_custom_call.1} parent=47 // pred_check_branch
          %1494 = sbr.rel (%p1492) target = $region60
        $region59: #{tpu_custom_call.1} parent=47 // pred_region
          %s1495 = smul.u32 8, %s25
        $region60: #{tpu_custom_call.1} parent=47 // pred_fallthru
          _
        // Predicated region
        $region61: #{tpu_custom_call.1} parent=47 // pred_check
          %p1496 = pneg %p247
        $region62: #{tpu_custom_call.1} parent=47 // pred_check_branch
          %1498 = sbr.rel (%p1496) target = $region64
        $region63: #{tpu_custom_call.1} parent=47 // pred_region
          %s1500 = ssub.s32 128, 128
          %1501 = vsyncadd %s1484, %s1500
          %s1502 = smul.addr %s25, 128
          %s1503 = scalar_lea.hbm %s9, %s1502
          %s1505 = sshll.u32 %s1487, 4
          %s1506 = int_to_ptr.vmem [resolvable:$true] %s1505
          %1508 = dma.vmem_to_hbm [thread:$0]  %s1506, 128, %s1503, %s1484
        $region64: #{tpu_custom_call.1} parent=47 // pred_fallthru
          _
      $region48: #{tpu_custom_call.1} parent=5 // pred_fallthru
        _
      %p1509 = scmp.le.s32.totalorder 2, %s20
      // Predicated region
      $region65: #{tpu_custom_call.1} parent=5 // pred_check
        %p1510 = pneg %p1509
      $region66: #{tpu_custom_call.1} parent=5 // pred_check_branch
        %1512 = sbr.rel (%p1510) target = $region68
      $region67: #{tpu_custom_call.1} parent=5 // pred_region
        %s1513 = ssub.s32 %s20, 2
        // Predicated region
        $region69: #{tpu_custom_call.1} parent=67 // pred_check
          %p1514 = pneg %p201
        $region70: #{tpu_custom_call.1} parent=67 // pred_check_branch
          %1516 = sbr.rel (%p1514) target = $region72
        $region71: #{tpu_custom_call.1} parent=67 // pred_region
          %s1517 = smul.u32 8, %s26
          %p1518 = scmp.lt.s32.totalorder %s1517, 15
          %s1519 = scalar_select %p1518, %s1517, 15
          %s1520 = smul.addr %s1519, 8
          %s1521 = scalar_lea.vmem %s7, %s1520
        $region72: #{tpu_custom_call.1} parent=67 // pred_fallthru
          _
        // Predicated region
        $region73: #{tpu_custom_call.1} parent=67 // pred_check
          %p1522 = pneg %p227
        $region74: #{tpu_custom_call.1} parent=67 // pred_check_branch
          %1524 = sbr.rel (%p1522) target = $region76
        $region75: #{tpu_custom_call.1} parent=67 // pred_region
          %s1525 = smul.u32 8, %s26
          %p1526 = scmp.lt.s32.totalorder %s1525, 15
          %s1527 = scalar_select %p1526, %s1525, 15
          %s1528 = smul.addr %s1527, 8
          %s1529 = scalar_lea.vmem %s8, %s1528
        $region76: #{tpu_custom_call.1} parent=67 // pred_fallthru
          _
        // Predicated region
        $region77: #{tpu_custom_call.1} parent=67 // pred_check
          %p1530 = pneg %p253
        $region78: #{tpu_custom_call.1} parent=67 // pred_check_branch
          %1532 = sbr.rel (%p1530) target = $region80
        $region79: #{tpu_custom_call.1} parent=67 // pred_region
          %s1533 = sand.u32 %s238, 1
          %s1534 = scalar_lea.sflag [#allocation4], %s1533
          %s1535 = sand.u32 %s238, 1
          %s1536 = smul.addr %s1535, 8
          %s1537 = scalar_lea.vmem [#allocation5], %s1536
          %1538 = dma.done %s1534, 128
        $region80: #{tpu_custom_call.1} parent=67 // pred_fallthru
          _
      $region68: #{tpu_custom_call.1} parent=5 // pred_fallthru
        _
    $region6: #{tpu_custom_call.1} parent=1 // loop_footer
      %s24 = sadd.s32 1, %s20
    $region7: #{tpu_custom_call.1} parent=1 // loop_footer_branch
      %19 = sbr.rel target = $region3
    $region8: #{tpu_custom_call.1} parent=1 // loop_exit
      _
    %1539 = vsyncpa [#allocation3], 1
    %s1540 = scalar_lea.sflag [#allocation3], 1
    %1541 = vsyncpa %s1540, 1
    %1542 = vsyncpa [#allocation4], 1
    %s1543 = scalar_lea.sflag [#allocation4], 1
    %1544 = vsyncpa %s1543, 1

</llo_original>
